<compile_context>
chip_gen: v7x
topology: tpu7x:2x2x1
jax: 0.10.0
libtpu: 0.0.40
codegen_flags: <defaults>
</compile_context>

<pallas_src>
import functools
import math

import jax
import jax.numpy as jnp
from jax.experimental import pallas as pl
from jax.experimental.pallas import tpu as pltpu


def _layernorm(x, gamma, beta, eps=1e-12):
    mean = jnp.mean(x, axis=-1, keepdims=True)
    var = jnp.mean((x - mean) ** 2, axis=-1, keepdims=True)
    return (x - mean) * jax.lax.rsqrt(var + eps) * gamma + beta


def _gelu_tanh(x):
    # Matches BertIntermediate.gelu exactly (tanh approximation).
    return 0.5 * x * (1.0 + jnp.tanh(math.sqrt(2.0 / math.pi) * (x + 0.044715 * x ** 3)))


def bert_layer_kernel(h_ref, mask_ref,
                      wqkv_ref, bqkv_ref,
                      wo_ref, bo_ref, g1_ref, b1_ref,
                      wi_ref, bi_ref, wo2_ref, bo2_ref, g2_ref, b2_ref,
                      out_ref,
                      q_s, k_s, v_s,
                      *, num_heads):
    S, H = h_ref.shape[1], h_ref.shape[2]
    TQ = out_ref.shape[1]
    dh = H // num_heads
    qi = pl.program_id(1)
    bf16 = jnp.bfloat16

    # --- fused QKV projection: once per batch element (query-tile 0) ---------
    @pl.when(qi == 0)
    def _():
        x_full = h_ref[0].astype(bf16)                                # (S, H)
        qkv = jnp.dot(x_full, wqkv_ref[...],
                      preferred_element_type=jnp.float32) + bqkv_ref[...]
        # Split into head-major (nh, S, dh) bf16 scratch (query pre-scaled via
        # the folded weights).  Static lane slices, done once per batch elem.
        for h in range(num_heads):
            q_s[h] = qkv[:, h * dh:(h + 1) * dh].astype(bf16)
            k_s[h] = qkv[:, H + h * dh:H + (h + 1) * dh].astype(bf16)
            v_s[h] = qkv[:, 2 * H + h * dh:2 * H + (h + 1) * dh].astype(bf16)

    start = pl.multiple_of(qi * TQ, TQ)

    # --- BertSelfAttention (heads batched on the MXU) ------------------------
    q3 = q_s[:, pl.ds(start, TQ), :]                                  # (nh, TQ, dh)
    s = jnp.einsum('nqd,nkd->nqk', q3, k_s[...],
                   preferred_element_type=jnp.float32)                # (nh, TQ, S)
    s = s + mask_ref[...]                                             # (1,1,S) broadcast
    s = s - jnp.max(s, axis=-1, keepdims=True)
    p = jnp.exp(s)
    p = p * pl.reciprocal(jnp.sum(p, axis=-1, keepdims=True), approx=True)
    # dropout(attention_probs) -> identity (eval mode)
    ctx = jnp.einsum('nqk,nkd->nqd', p.astype(bf16), v_s[...],
                     preferred_element_type=jnp.float32)              # (nh, TQ, dh)
    ctx2d = jnp.concatenate([ctx[h] for h in range(num_heads)], axis=-1)  # (TQ, H)

    x_tile = h_ref[0, pl.ds(start, TQ), :]                            # (TQ, H) residual

    # --- BertSelfOutput -------------------------------------------------------
    attn = jnp.dot(ctx2d.astype(bf16), wo_ref[...],
                   preferred_element_type=jnp.float32) + bo_ref[...]
    attn_out = _layernorm(attn + x_tile, g1_ref[...], b1_ref[...])

    # --- BertIntermediate -----------------------------------------------------
    inter = _gelu_tanh(jnp.dot(attn_out.astype(bf16), wi_ref[...],
                               preferred_element_type=jnp.float32) + bi_ref[...])

    # --- BertOutput -----------------------------------------------------------
    out = jnp.dot(inter.astype(bf16), wo2_ref[...],
                  preferred_element_type=jnp.float32) + bo2_ref[...]
    out_ref[0] = _layernorm(out + attn_out, g2_ref[...], b2_ref[...])


def _pick_query_tile(S, max_tq=512):
    """Largest query tile <= max_tq that divides S and is a multiple of 8."""
    if S <= max_tq:
        return S
    for t in range(max_tq - (max_tq % 8), 7, -8):
        if S % t == 0:
            return t
    return S


def bert_layer(hidden, mask, params, num_heads):
    """hidden: (B,S,H) f32.  mask: (B,1,S) additive key mask (0 = attend)."""
    B, S, H = hidden.shape
    I = params["wi"].shape[1]
    dh = H // num_heads
    TQ = _pick_query_tile(S)
    nq = S // TQ
    bf16 = jnp.bfloat16

    # Fuse QKV weights/biases and fold the 1/sqrt(head_dim) scale into Q.
    scale = 1.0 / math.sqrt(dh)
    wqkv = jnp.concatenate(
        [params["wq"] * scale, params["wk"], params["wv"]], axis=1).astype(bf16)
    bqkv = jnp.concatenate(
        [params["bq"] * scale, params["bk"], params["bv"]], axis=1).astype(jnp.float32)

    kernel = functools.partial(bert_layer_kernel, num_heads=num_heads)

    def const_spec(shape):
        return pl.BlockSpec(shape, lambda b, q, _n=len(shape): (0,) * _n)

    in_specs = [
        pl.BlockSpec((1, S, H), lambda b, q: (b, 0, 0)),   # hidden_states (full seq)
        pl.BlockSpec((1, 1, S), lambda b, q: (b, 0, 0)),   # additive key mask
        const_spec((H, 3 * H)), const_spec((1, 3 * H)),    # fused QKV dense
        const_spec((H, H)), const_spec((1, H)),            # attention output dense
        const_spec((1, H)), const_spec((1, H)),            # LayerNorm 1 (gamma, beta)
        const_spec((H, I)), const_spec((1, I)),            # intermediate dense
        const_spec((I, H)), const_spec((1, H)),            # output dense
        const_spec((1, H)), const_spec((1, H)),            # LayerNorm 2 (gamma, beta)
    ]

    return pl.pallas_call(
        kernel,
        out_shape=jax.ShapeDtypeStruct((B, S, H), jnp.float32),
        grid_spec=pltpu.PrefetchScalarGridSpec(
            num_scalar_prefetch=0,
            grid=(B, nq),
            in_specs=in_specs,
            out_specs=pl.BlockSpec((1, TQ, H), lambda b, q: (b, q, 0)),
            scratch_shapes=[pltpu.VMEM((num_heads, S, dh), bf16)] * 3,
        ),
        compiler_params=pltpu.CompilerParams(
            dimension_semantics=("parallel", "arbitrary"),
            # Keep below v7x's 64 MiB physical VMEM while leaving headroom
            # above the conservative defaults on v5e/v6e.
            vmem_limit_bytes=48 * 1024 * 1024),
    )(hidden, mask, wqkv, bqkv,
      params["wo"].astype(bf16), params["bo"],
      params["g1"], params["b1"],
      params["wi"].astype(bf16), params["bi"],
      params["wo2"].astype(bf16), params["bo2"],
      params["g2"], params["b2"])


def bert_layer_reference(hidden, mask, params, num_heads):
    """Pure-JAX f32 reference mirroring the PyTorch forward (eval mode)."""
    B, S, H = hidden.shape
    dh = H // num_heads
    q = hidden @ params["wq"] + params["bq"][0]
    k = hidden @ params["wk"] + params["bk"][0]
    v = hidden @ params["wv"] + params["bv"][0]

    def split(t):  # (B,S,H) -> (B,nh,S,dh)
        return t.reshape(B, S, num_heads, dh).transpose(0, 2, 1, 3)

    qh, kh, vh = split(q), split(k), split(v)
    scores = jnp.einsum('bhqd,bhkd->bhqk', qh, kh) / math.sqrt(dh)
    scores = scores + mask[:, None, :, :]          # (B,1,1,S) additive key mask
    probs = jax.nn.softmax(scores, axis=-1)
    ctx = jnp.einsum('bhqk,bhkd->bhqd', probs, vh)
    ctx = ctx.transpose(0, 2, 1, 3).reshape(B, S, H)

    attn = ctx @ params["wo"] + params["bo"][0]
    attn_out = _layernorm(attn + hidden, params["g1"][0], params["b1"][0])
    inter = _gelu_tanh(attn_out @ params["wi"] + params["bi"][0])
    out = inter @ params["wo2"] + params["bo2"][0]
    return _layernorm(out + attn_out, params["g2"][0], params["b2"][0])


if __name__ == "__main__":
    B, S, H = 2, 8, 32
    num_heads = 4
    I = 4 * H  # intermediate_size = 128

    key = jax.random.PRNGKey(0)
    ks = jax.random.split(key, 16)

    def w(k, shape, s=0.02):
        return (s * jax.random.normal(k, shape)).astype(jnp.float32)

    params = {
        "wq": w(ks[0], (H, H)), "bq": w(ks[1], (1, H)),
        "wk": w(ks[2], (H, H)), "bk": w(ks[3], (1, H)),
        "wv": w(ks[4], (H, H)), "bv": w(ks[5], (1, H)),
        "wo": w(ks[6], (H, H)), "bo": w(ks[7], (1, H)),
        "g1": jnp.ones((1, H), jnp.float32), "b1": jnp.zeros((1, H), jnp.float32),
        "wi": w(ks[8], (H, I)), "bi": w(ks[9], (1, I)),
        "wo2": w(ks[10], (I, H)), "bo2": w(ks[11], (1, H)),
        "g2": jnp.ones((1, H), jnp.float32), "b2": jnp.zeros((1, H), jnp.float32),
    }

    hidden = jax.random.normal(ks[12], (B, S, H), dtype=jnp.float32)
    # Key-only additive attention mask (0 = attend, -1e4 = masked).
    key_valid = jnp.array([S, S - 2])  # batch 0 attends all keys, batch 1 masks last 2
    attention_mask = jnp.where(
        jnp.arange(S)[None, None, :] < key_valid[:, None, None],
        0.0, -10000.0).astype(jnp.float32)                 # (B, 1, S)

    out = jax.block_until_ready(bert_layer(hidden, attention_mask, params, num_heads))
    ref = bert_layer_reference(hidden, attention_mask, params, num_heads)

    assert out.shape == (B, S, H)
    # bf16 MXU operands + approximate reciprocal => slightly looser tolerance.
    assert jnp.allclose(out, ref, atol=5e-3, rtol=5e-3), "mismatch vs reference"

    print("KERNEL_OK")
</pallas_src>

<mosaic_0001>
module attributes {stable_mosaic.version = 11 : i64} {
  func.func @bert_layer_kernel(%arg0: i32, %arg1: i32, %arg2: memref<1x8x32xf32, #tpu.memory_space<vmem>>, %arg3: memref<1x1x8xf32, #tpu.memory_space<vmem>>, %arg4: memref<32x96xbf16, #tpu.memory_space<vmem>>, %arg5: memref<1x96xf32, #tpu.memory_space<vmem>>, %arg6: memref<32x32xbf16, #tpu.memory_space<vmem>>, %arg7: memref<1x32xf32, #tpu.memory_space<vmem>>, %arg8: memref<1x32xf32, #tpu.memory_space<vmem>>, %arg9: memref<1x32xf32, #tpu.memory_space<vmem>>, %arg10: memref<32x128xbf16, #tpu.memory_space<vmem>>, %arg11: memref<1x128xf32, #tpu.memory_space<vmem>>, %arg12: memref<128x32xbf16, #tpu.memory_space<vmem>>, %arg13: memref<1x32xf32, #tpu.memory_space<vmem>>, %arg14: memref<1x32xf32, #tpu.memory_space<vmem>>, %arg15: memref<1x32xf32, #tpu.memory_space<vmem>>, %arg16: memref<1x8x32xf32, #tpu.memory_space<vmem>>, %arg17: memref<4x8x8xbf16, #tpu.memory_space<vmem>>, %arg18: memref<4x8x8xbf16, #tpu.memory_space<vmem>>, %arg19: memref<4x8x8xbf16, #tpu.memory_space<vmem>>) attributes {dimension_semantics = [#tpu.dimension_semantics<parallel>, #tpu.dimension_semantics<arbitrary>], iteration_bounds = array<i64: 2, 1>, scalar_prefetch = 0 : i64, scratch_operands = 3 : i64, tpu.core_type = #tpu.core_type<tc>, window_params = [{transform_indices = @transform_0, window_bounds = array<i64: 1, 8, 32>}, {transform_indices = @transform_1, window_bounds = array<i64: 1, 1, 8>}, {pipeline_mode = #tpu.pipeline_mode<synchronous>, transform_indices = @transform_2, window_bounds = array<i64: 32, 96>}, {pipeline_mode = #tpu.pipeline_mode<synchronous>, transform_indices = @transform_3, window_bounds = array<i64: 1, 96>}, {pipeline_mode = #tpu.pipeline_mode<synchronous>, transform_indices = @transform_4, window_bounds = array<i64: 32, 32>}, {pipeline_mode = #tpu.pipeline_mode<synchronous>, transform_indices = @transform_5, window_bounds = array<i64: 1, 32>}, {pipeline_mode = #tpu.pipeline_mode<synchronous>, transform_indices = @transform_6, window_bounds = array<i64: 1, 32>}, {pipeline_mode = #tpu.pipeline_mode<synchronous>, transform_indices = @transform_7, window_bounds = array<i64: 1, 32>}, {pipeline_mode = #tpu.pipeline_mode<synchronous>, transform_indices = @transform_8, window_bounds = array<i64: 32, 128>}, {pipeline_mode = #tpu.pipeline_mode<synchronous>, transform_indices = @transform_9, window_bounds = array<i64: 1, 128>}, {pipeline_mode = #tpu.pipeline_mode<synchronous>, transform_indices = @transform_10, window_bounds = array<i64: 128, 32>}, {pipeline_mode = #tpu.pipeline_mode<synchronous>, transform_indices = @transform_11, window_bounds = array<i64: 1, 32>}, {pipeline_mode = #tpu.pipeline_mode<synchronous>, transform_indices = @transform_12, window_bounds = array<i64: 1, 32>}, {pipeline_mode = #tpu.pipeline_mode<synchronous>, transform_indices = @transform_13, window_bounds = array<i64: 1, 32>}, {transform_indices = @transform_14, window_bounds = array<i64: 1, 8, 32>}]} {
    %c0_i32 = arith.constant 0 : i32
    %0 = arith.cmpi eq, %arg1, %c0_i32 : i32
    %1 = arith.extui %0 : i1 to i32
    %c0_i32_0 = arith.constant 0 : i32
    %2 = arith.cmpi ne, %1, %c0_i32_0 : i32
    scf.if %2 {
      %c0_56 = arith.constant 0 : index
      %c0_57 = arith.constant 0 : index
      %c0_58 = arith.constant 0 : index
      %121 = vector.load %arg2[%c0_56, %c0_57, %c0_58] : memref<1x8x32xf32, #tpu.memory_space<vmem>>, vector<1x8x32xf32>
      %122 = vector.shape_cast %121 : vector<1x8x32xf32> to vector<8x32xf32>
      %123 = arith.truncf %122 : vector<8x32xf32> to vector<8x32xbf16>
      %c0_59 = arith.constant 0 : index
      %c0_60 = arith.constant 0 : index
      %124 = vector.load %arg4[%c0_59, %c0_60] : memref<32x96xbf16, #tpu.memory_space<vmem>>, vector<32x96xbf16>
      %cst_61 = arith.constant dense<0.000000e+00> : vector<8x96xf32>
      %125 = tpu.matmul %123, %124, %cst_61 {dimension_numbers = #tpu.dot_dimension_numbers<[1], [0], [0], [1], [0, 0, 1, 1], [], []>} : vector<8x32xbf16>, vector<32x96xbf16>, vector<8x96xf32> -> vector<8x96xf32>
      %c0_62 = arith.constant 0 : index
      %c0_63 = arith.constant 0 : index
      %126 = vector.load %arg5[%c0_62, %c0_63] : memref<1x96xf32, #tpu.memory_space<vmem>>, vector<1x96xf32>
      %127 = vector.broadcast %126 : vector<1x96xf32> to vector<8x96xf32>
      %128 = arith.addf %125, %127 : vector<8x96xf32>
      %129 = vector.extract_strided_slice %128 {offsets = [0, 0], sizes = [8, 8], strides = [1, 1]} : vector<8x96xf32> to vector<8x8xf32>
      %130 = arith.truncf %129 : vector<8x8xf32> to vector<8x8xbf16>
      %c0_64 = arith.constant 0 : index
      %c0_65 = arith.constant 0 : index
      %c0_66 = arith.constant 0 : index
      %131 = vector.load %arg17[%c0_64, %c0_65, %c0_66] : memref<4x8x8xbf16, #tpu.memory_space<vmem>>, vector<1x8x8xbf16>
      %132 = vector.shape_cast %131 : vector<1x8x8xbf16> to vector<8x8xbf16>
      %133 = vector.shape_cast %130 : vector<8x8xbf16> to vector<1x8x8xbf16>
      tpu.vector_store %arg17[%c0_64, %c0_65, %c0_66], %133 {strides = array<i32>} : memref<4x8x8xbf16, #tpu.memory_space<vmem>>, vector<1x8x8xbf16>,
      %134 = vector.extract_strided_slice %128 {offsets = [0, 32], sizes = [8, 8], strides = [1, 1]} : vector<8x96xf32> to vector<8x8xf32>
      %135 = arith.truncf %134 : vector<8x8xf32> to vector<8x8xbf16>
      %c0_67 = arith.constant 0 : index
      %c0_68 = arith.constant 0 : index
      %c0_69 = arith.constant 0 : index
      %136 = vector.load %arg18[%c0_67, %c0_68, %c0_69] : memref<4x8x8xbf16, #tpu.memory_space<vmem>>, vector<1x8x8xbf16>
      %137 = vector.shape_cast %136 : vector<1x8x8xbf16> to vector<8x8xbf16>
      %138 = vector.shape_cast %135 : vector<8x8xbf16> to vector<1x8x8xbf16>
      tpu.vector_store %arg18[%c0_67, %c0_68, %c0_69], %138 {strides = array<i32>} : memref<4x8x8xbf16, #tpu.memory_space<vmem>>, vector<1x8x8xbf16>,
      %139 = vector.extract_strided_slice %128 {offsets = [0, 64], sizes = [8, 8], strides = [1, 1]} : vector<8x96xf32> to vector<8x8xf32>
      %140 = arith.truncf %139 : vector<8x8xf32> to vector<8x8xbf16>
      %c0_70 = arith.constant 0 : index
      %c0_71 = arith.constant 0 : index
      %c0_72 = arith.constant 0 : index
      %141 = vector.load %arg19[%c0_70, %c0_71, %c0_72] : memref<4x8x8xbf16, #tpu.memory_space<vmem>>, vector<1x8x8xbf16>
      %142 = vector.shape_cast %141 : vector<1x8x8xbf16> to vector<8x8xbf16>
      %143 = vector.shape_cast %140 : vector<8x8xbf16> to vector<1x8x8xbf16>
      tpu.vector_store %arg19[%c0_70, %c0_71, %c0_72], %143 {strides = array<i32>} : memref<4x8x8xbf16, #tpu.memory_space<vmem>>, vector<1x8x8xbf16>,
      %144 = vector.extract_strided_slice %128 {offsets = [0, 8], sizes = [8, 8], strides = [1, 1]} : vector<8x96xf32> to vector<8x8xf32>
      %145 = arith.truncf %144 : vector<8x8xf32> to vector<8x8xbf16>
      %c1 = arith.constant 1 : index
      %c0_73 = arith.constant 0 : index
      %c0_74 = arith.constant 0 : index
      %146 = vector.load %arg17[%c1, %c0_73, %c0_74] : memref<4x8x8xbf16, #tpu.memory_space<vmem>>, vector<1x8x8xbf16>
      %147 = vector.shape_cast %146 : vector<1x8x8xbf16> to vector<8x8xbf16>
      %148 = vector.shape_cast %145 : vector<8x8xbf16> to vector<1x8x8xbf16>
      tpu.vector_store %arg17[%c1, %c0_73, %c0_74], %148 {strides = array<i32>} : memref<4x8x8xbf16, #tpu.memory_space<vmem>>, vector<1x8x8xbf16>,
      %149 = vector.extract_strided_slice %128 {offsets = [0, 40], sizes = [8, 8], strides = [1, 1]} : vector<8x96xf32> to vector<8x8xf32>
      %150 = arith.truncf %149 : vector<8x8xf32> to vector<8x8xbf16>
      %c1_75 = arith.constant 1 : index
      %c0_76 = arith.constant 0 : index
      %c0_77 = arith.constant 0 : index
      %151 = vector.load %arg18[%c1_75, %c0_76, %c0_77] : memref<4x8x8xbf16, #tpu.memory_space<vmem>>, vector<1x8x8xbf16>
      %152 = vector.shape_cast %151 : vector<1x8x8xbf16> to vector<8x8xbf16>
      %153 = vector.shape_cast %150 : vector<8x8xbf16> to vector<1x8x8xbf16>
      tpu.vector_store %arg18[%c1_75, %c0_76, %c0_77], %153 {strides = array<i32>} : memref<4x8x8xbf16, #tpu.memory_space<vmem>>, vector<1x8x8xbf16>,
      %154 = vector.extract_strided_slice %128 {offsets = [0, 72], sizes = [8, 8], strides = [1, 1]} : vector<8x96xf32> to vector<8x8xf32>
      %155 = arith.truncf %154 : vector<8x8xf32> to vector<8x8xbf16>
      %c1_78 = arith.constant 1 : index
      %c0_79 = arith.constant 0 : index
      %c0_80 = arith.constant 0 : index
      %156 = vector.load %arg19[%c1_78, %c0_79, %c0_80] : memref<4x8x8xbf16, #tpu.memory_space<vmem>>, vector<1x8x8xbf16>
      %157 = vector.shape_cast %156 : vector<1x8x8xbf16> to vector<8x8xbf16>
      %158 = vector.shape_cast %155 : vector<8x8xbf16> to vector<1x8x8xbf16>
      tpu.vector_store %arg19[%c1_78, %c0_79, %c0_80], %158 {strides = array<i32>} : memref<4x8x8xbf16, #tpu.memory_space<vmem>>, vector<1x8x8xbf16>,
      %159 = vector.extract_strided_slice %128 {offsets = [0, 16], sizes = [8, 8], strides = [1, 1]} : vector<8x96xf32> to vector<8x8xf32>
      %160 = arith.truncf %159 : vector<8x8xf32> to vector<8x8xbf16>
      %c2 = arith.constant 2 : index
      %c0_81 = arith.constant 0 : index
      %c0_82 = arith.constant 0 : index
      %161 = vector.load %arg17[%c2, %c0_81, %c0_82] : memref<4x8x8xbf16, #tpu.memory_space<vmem>>, vector<1x8x8xbf16>
      %162 = vector.shape_cast %161 : vector<1x8x8xbf16> to vector<8x8xbf16>
      %163 = vector.shape_cast %160 : vector<8x8xbf16> to vector<1x8x8xbf16>
      tpu.vector_store %arg17[%c2, %c0_81, %c0_82], %163 {strides = array<i32>} : memref<4x8x8xbf16, #tpu.memory_space<vmem>>, vector<1x8x8xbf16>,
      %164 = vector.extract_strided_slice %128 {offsets = [0, 48], sizes = [8, 8], strides = [1, 1]} : vector<8x96xf32> to vector<8x8xf32>
      %165 = arith.truncf %164 : vector<8x8xf32> to vector<8x8xbf16>
      %c2_83 = arith.constant 2 : index
      %c0_84 = arith.constant 0 : index
      %c0_85 = arith.constant 0 : index
      %166 = vector.load %arg18[%c2_83, %c0_84, %c0_85] : memref<4x8x8xbf16, #tpu.memory_space<vmem>>, vector<1x8x8xbf16>
      %167 = vector.shape_cast %166 : vector<1x8x8xbf16> to vector<8x8xbf16>
      %168 = vector.shape_cast %165 : vector<8x8xbf16> to vector<1x8x8xbf16>
      tpu.vector_store %arg18[%c2_83, %c0_84, %c0_85], %168 {strides = array<i32>} : memref<4x8x8xbf16, #tpu.memory_space<vmem>>, vector<1x8x8xbf16>,
      %169 = vector.extract_strided_slice %128 {offsets = [0, 80], sizes = [8, 8], strides = [1, 1]} : vector<8x96xf32> to vector<8x8xf32>
      %170 = arith.truncf %169 : vector<8x8xf32> to vector<8x8xbf16>
      %c2_86 = arith.constant 2 : index
      %c0_87 = arith.constant 0 : index
      %c0_88 = arith.constant 0 : index
      %171 = vector.load %arg19[%c2_86, %c0_87, %c0_88] : memref<4x8x8xbf16, #tpu.memory_space<vmem>>, vector<1x8x8xbf16>
      %172 = vector.shape_cast %171 : vector<1x8x8xbf16> to vector<8x8xbf16>
      %173 = vector.shape_cast %170 : vector<8x8xbf16> to vector<1x8x8xbf16>
      tpu.vector_store %arg19[%c2_86, %c0_87, %c0_88], %173 {strides = array<i32>} : memref<4x8x8xbf16, #tpu.memory_space<vmem>>, vector<1x8x8xbf16>,
      %174 = vector.extract_strided_slice %128 {offsets = [0, 24], sizes = [8, 8], strides = [1, 1]} : vector<8x96xf32> to vector<8x8xf32>
      %175 = arith.truncf %174 : vector<8x8xf32> to vector<8x8xbf16>
      %c3 = arith.constant 3 : index
      %c0_89 = arith.constant 0 : index
      %c0_90 = arith.constant 0 : index
      %176 = vector.load %arg17[%c3, %c0_89, %c0_90] : memref<4x8x8xbf16, #tpu.memory_space<vmem>>, vector<1x8x8xbf16>
      %177 = vector.shape_cast %176 : vector<1x8x8xbf16> to vector<8x8xbf16>
      %178 = vector.shape_cast %175 : vector<8x8xbf16> to vector<1x8x8xbf16>
      tpu.vector_store %arg17[%c3, %c0_89, %c0_90], %178 {strides = array<i32>} : memref<4x8x8xbf16, #tpu.memory_space<vmem>>, vector<1x8x8xbf16>,
      %179 = vector.extract_strided_slice %128 {offsets = [0, 56], sizes = [8, 8], strides = [1, 1]} : vector<8x96xf32> to vector<8x8xf32>
      %180 = arith.truncf %179 : vector<8x8xf32> to vector<8x8xbf16>
      %c3_91 = arith.constant 3 : index
      %c0_92 = arith.constant 0 : index
      %c0_93 = arith.constant 0 : index
      %181 = vector.load %arg18[%c3_91, %c0_92, %c0_93] : memref<4x8x8xbf16, #tpu.memory_space<vmem>>, vector<1x8x8xbf16>
      %182 = vector.shape_cast %181 : vector<1x8x8xbf16> to vector<8x8xbf16>
      %183 = vector.shape_cast %180 : vector<8x8xbf16> to vector<1x8x8xbf16>
      tpu.vector_store %arg18[%c3_91, %c0_92, %c0_93], %183 {strides = array<i32>} : memref<4x8x8xbf16, #tpu.memory_space<vmem>>, vector<1x8x8xbf16>,
      %184 = vector.extract_strided_slice %128 {offsets = [0, 88], sizes = [8, 8], strides = [1, 1]} : vector<8x96xf32> to vector<8x8xf32>
      %185 = arith.truncf %184 : vector<8x8xf32> to vector<8x8xbf16>
      %c3_94 = arith.constant 3 : index
      %c0_95 = arith.constant 0 : index
      %c0_96 = arith.constant 0 : index
      %186 = vector.load %arg19[%c3_94, %c0_95, %c0_96] : memref<4x8x8xbf16, #tpu.memory_space<vmem>>, vector<1x8x8xbf16>
      %187 = vector.shape_cast %186 : vector<1x8x8xbf16> to vector<8x8xbf16>
      %188 = vector.shape_cast %185 : vector<8x8xbf16> to vector<1x8x8xbf16>
      tpu.vector_store %arg19[%c3_94, %c0_95, %c0_96], %188 {strides = array<i32>} : memref<4x8x8xbf16, #tpu.memory_space<vmem>>, vector<1x8x8xbf16>,
    } else {
    }
    %c8_i32 = arith.constant 8 : i32
    %3 = arith.muli %arg1, %c8_i32 : i32
    %4 = tpu.assume_multiple %3, 8 : i32
    %c0 = arith.constant 0 : index
    %5 = arith.index_cast %4 : i32 to index
    %c0_1 = arith.constant 0 : index
    %6 = vector.load %arg17[%c0, %5, %c0_1] : memref<4x8x8xbf16, #tpu.memory_space<vmem>>, vector<4x8x8xbf16>
    %c0_2 = arith.constant 0 : index
    %c0_3 = arith.constant 0 : index
    %c0_4 = arith.constant 0 : index
    %7 = vector.load %arg18[%c0_2, %c0_3, %c0_4] : memref<4x8x8xbf16, #tpu.memory_space<vmem>>, vector<4x8x8xbf16>
    "tpu.trace_start"() <{level = 10 : i32, message = "nqd,nkd->nqk"}> : () -> ()
    %cst = arith.constant dense<0.000000e+00> : vector<4x8x8xf32>
    %8 = tpu.matmul %6, %7, %cst {dimension_numbers = #tpu.dot_dimension_numbers<[2], [2], [1], [1], [0, 0, 0, 1, 1, 1], [0], [0]>} : vector<4x8x8xbf16>, vector<4x8x8xbf16>, vector<4x8x8xf32> -> vector<4x8x8xf32>
    "tpu.trace_stop"() : () -> ()
    %c0_5 = arith.constant 0 : index
    %c0_6 = arith.constant 0 : index
    %c0_7 = arith.constant 0 : index
    %9 = vector.load %arg3[%c0_5, %c0_6, %c0_7] : memref<1x1x8xf32, #tpu.memory_space<vmem>>, vector<1x1x8xf32>
    %10 = vector.broadcast %9 : vector<1x1x8xf32> to vector<4x8x8xf32>
    %11 = arith.addf %8, %10 : vector<4x8x8xf32>
    %cst_8 = arith.constant dense<0xFF800000> : vector<4x8xf32>
    %12 = vector.multi_reduction <maximumf>, %11, %cst_8 [2] : vector<4x8x8xf32> to vector<4x8xf32>
    %13 = vector.shape_cast %12 : vector<4x8xf32> to vector<4x8x1xf32>
    %14 = vector.broadcast %13 : vector<4x8x1xf32> to vector<4x8x8xf32>
    %15 = arith.subf %11, %14 : vector<4x8x8xf32>
    %16 = math.exp %15 : vector<4x8x8xf32>
    %cst_9 = arith.constant dense<0.000000e+00> : vector<4x8xf32>
    %17 = vector.multi_reduction <add>, %16, %cst_9 [2] : vector<4x8x8xf32> to vector<4x8xf32>
    %18 = vector.shape_cast %17 : vector<4x8xf32> to vector<4x8x1xf32>
    %19 = tpu.reciprocal %18 {approx = true} : vector<4x8x1xf32> -> vector<4x8x1xf32>
    %20 = vector.broadcast %19 : vector<4x8x1xf32> to vector<4x8x8xf32>
    %21 = arith.mulf %16, %20 : vector<4x8x8xf32>
    %22 = arith.truncf %21 : vector<4x8x8xf32> to vector<4x8x8xbf16>
    %c0_10 = arith.constant 0 : index
    %c0_11 = arith.constant 0 : index
    %c0_12 = arith.constant 0 : index
    %23 = vector.load %arg19[%c0_10, %c0_11, %c0_12] : memref<4x8x8xbf16, #tpu.memory_space<vmem>>, vector<4x8x8xbf16>
    "tpu.trace_start"() <{level = 10 : i32, message = "nqk,nkd->nqd"}> : () -> ()
    %cst_13 = arith.constant dense<0.000000e+00> : vector<4x8x8xf32>
    %24 = tpu.matmul %22, %23, %cst_13 {dimension_numbers = #tpu.dot_dimension_numbers<[2], [1], [1], [2], [0, 0, 0, 1, 1, 2], [0], [0]>} : vector<4x8x8xbf16>, vector<4x8x8xbf16>, vector<4x8x8xf32> -> vector<4x8x8xf32>
    "tpu.trace_stop"() : () -> ()
    %25 = vector.extract_strided_slice %24 {offsets = [0, 0, 0], sizes = [1, 8, 8], strides = [1, 1, 1]} : vector<4x8x8xf32> to vector<1x8x8xf32>
    %26 = vector.shape_cast %25 : vector<1x8x8xf32> to vector<8x8xf32>
    %27 = vector.extract_strided_slice %24 {offsets = [1, 0, 0], sizes = [1, 8, 8], strides = [1, 1, 1]} : vector<4x8x8xf32> to vector<1x8x8xf32>
    %28 = vector.shape_cast %27 : vector<1x8x8xf32> to vector<8x8xf32>
    %29 = vector.extract_strided_slice %24 {offsets = [2, 0, 0], sizes = [1, 8, 8], strides = [1, 1, 1]} : vector<4x8x8xf32> to vector<1x8x8xf32>
    %30 = vector.shape_cast %29 : vector<1x8x8xf32> to vector<8x8xf32>
    %31 = vector.extract_strided_slice %24 {offsets = [3, 0, 0], sizes = [1, 8, 8], strides = [1, 1, 1]} : vector<4x8x8xf32> to vector<1x8x8xf32>
    %32 = vector.shape_cast %31 : vector<1x8x8xf32> to vector<8x8xf32>
    %33 = tpu.concatenate %26, %28, %30, %32 in 1 : vector<8x8xf32>, vector<8x8xf32>, vector<8x8xf32>, vector<8x8xf32> -> vector<8x32xf32>
    %c0_14 = arith.constant 0 : index
    %34 = arith.index_cast %4 : i32 to index
    %c0_15 = arith.constant 0 : index
    %35 = vector.load %arg2[%c0_14, %34, %c0_15] : memref<1x8x32xf32, #tpu.memory_space<vmem>>, vector<1x8x32xf32>
    %36 = vector.shape_cast %35 : vector<1x8x32xf32> to vector<8x32xf32>
    %37 = arith.truncf %33 : vector<8x32xf32> to vector<8x32xbf16>
    %c0_16 = arith.constant 0 : index
    %c0_17 = arith.constant 0 : index
    %38 = vector.load %arg6[%c0_16, %c0_17] : memref<32x32xbf16, #tpu.memory_space<vmem>>, vector<32x32xbf16>
    %cst_18 = arith.constant dense<0.000000e+00> : vector<8x32xf32>
    %39 = tpu.matmul %37, %38, %cst_18 {dimension_numbers = #tpu.dot_dimension_numbers<[1], [0], [0], [1], [0, 0, 1, 1], [], []>} : vector<8x32xbf16>, vector<32x32xbf16>, vector<8x32xf32> -> vector<8x32xf32>
    %c0_19 = arith.constant 0 : index
    %c0_20 = arith.constant 0 : index
    %40 = vector.load %arg7[%c0_19, %c0_20] : memref<1x32xf32, #tpu.memory_space<vmem>>, vector<1x32xf32>
    %41 = vector.broadcast %40 : vector<1x32xf32> to vector<8x32xf32>
    %42 = arith.addf %39, %41 : vector<8x32xf32>
    %43 = arith.addf %42, %36 : vector<8x32xf32>
    %c0_21 = arith.constant 0 : index
    %c0_22 = arith.constant 0 : index
    %44 = vector.load %arg8[%c0_21, %c0_22] : memref<1x32xf32, #tpu.memory_space<vmem>>, vector<1x32xf32>
    %c0_23 = arith.constant 0 : index
    %c0_24 = arith.constant 0 : index
    %45 = vector.load %arg9[%c0_23, %c0_24] : memref<1x32xf32, #tpu.memory_space<vmem>>, vector<1x32xf32>
    %cst_25 = arith.constant dense<0.000000e+00> : vector<8xf32>
    %46 = vector.multi_reduction <add>, %43, %cst_25 [1] : vector<8x32xf32> to vector<8xf32>
    %47 = vector.shape_cast %46 : vector<8xf32> to vector<8x1xf32>
    %cst_26 = arith.constant 3.200000e+01 : f32
    %48 = vector.broadcast %cst_26 : f32 to vector<8x1xf32>
    %49 = arith.divf %47, %48 : vector<8x1xf32>
    %50 = vector.broadcast %49 : vector<8x1xf32> to vector<8x32xf32>
    %51 = arith.subf %43, %50 : vector<8x32xf32>
    %52 = arith.mulf %51, %51 : vector<8x32xf32>
    %cst_27 = arith.constant dense<0.000000e+00> : vector<8xf32>
    %53 = vector.multi_reduction <add>, %52, %cst_27 [1] : vector<8x32xf32> to vector<8xf32>
    %54 = vector.shape_cast %53 : vector<8xf32> to vector<8x1xf32>
    %cst_28 = arith.constant 3.200000e+01 : f32
    %55 = vector.broadcast %cst_28 : f32 to vector<8x1xf32>
    %56 = arith.divf %54, %55 : vector<8x1xf32>
    %57 = vector.broadcast %49 : vector<8x1xf32> to vector<8x32xf32>
    %58 = arith.subf %43, %57 : vector<8x32xf32>
    %cst_29 = arith.constant 9.99999996E-13 : f32
    %59 = vector.broadcast %cst_29 : f32 to vector<8x1xf32>
    %60 = arith.addf %56, %59 : vector<8x1xf32>
    %61 = math.rsqrt %60 : vector<8x1xf32>
    %62 = vector.broadcast %61 : vector<8x1xf32> to vector<8x32xf32>
    %63 = arith.mulf %58, %62 : vector<8x32xf32>
    %64 = vector.broadcast %44 : vector<1x32xf32> to vector<8x32xf32>
    %65 = arith.mulf %63, %64 : vector<8x32xf32>
    %66 = vector.broadcast %45 : vector<1x32xf32> to vector<8x32xf32>
    %67 = arith.addf %65, %66 : vector<8x32xf32>
    %68 = arith.truncf %67 : vector<8x32xf32> to vector<8x32xbf16>
    %c0_30 = arith.constant 0 : index
    %c0_31 = arith.constant 0 : index
    %69 = vector.load %arg10[%c0_30, %c0_31] : memref<32x128xbf16, #tpu.memory_space<vmem>>, vector<32x128xbf16>
    %cst_32 = arith.constant dense<0.000000e+00> : vector<8x128xf32>
    %70 = tpu.matmul %68, %69, %cst_32 {dimension_numbers = #tpu.dot_dimension_numbers<[1], [0], [0], [1], [0, 0, 1, 1], [], []>} : vector<8x32xbf16>, vector<32x128xbf16>, vector<8x128xf32> -> vector<8x128xf32>
    %c0_33 = arith.constant 0 : index
    %c0_34 = arith.constant 0 : index
    %71 = vector.load %arg11[%c0_33, %c0_34] : memref<1x128xf32, #tpu.memory_space<vmem>>, vector<1x128xf32>
    %72 = vector.broadcast %71 : vector<1x128xf32> to vector<8x128xf32>
    %73 = arith.addf %70, %72 : vector<8x128xf32>
    %cst_35 = arith.constant 5.000000e-01 : f32
    %74 = vector.broadcast %cst_35 : f32 to vector<8x128xf32>
    %75 = arith.mulf %74, %73 : vector<8x128xf32>
    %76 = arith.mulf %73, %73 : vector<8x128xf32>
    %77 = arith.mulf %73, %76 : vector<8x128xf32>
    %cst_36 = arith.constant 4.471500e-02 : f32
    %78 = vector.broadcast %cst_36 : f32 to vector<8x128xf32>
    %79 = arith.mulf %78, %77 : vector<8x128xf32>
    %80 = arith.addf %73, %79 : vector<8x128xf32>
    %cst_37 = arith.constant 0.797884583 : f32
    %81 = vector.broadcast %cst_37 : f32 to vector<8x128xf32>
    %82 = arith.mulf %81, %80 : vector<8x128xf32>
    %83 = math.tanh %82 : vector<8x128xf32>
    %cst_38 = arith.constant 1.000000e+00 : f32
    %84 = vector.broadcast %cst_38 : f32 to vector<8x128xf32>
    %85 = arith.addf %84, %83 : vector<8x128xf32>
    %86 = arith.mulf %75, %85 : vector<8x128xf32>
    %87 = arith.truncf %86 : vector<8x128xf32> to vector<8x128xbf16>
    %c0_39 = arith.constant 0 : index
    %c0_40 = arith.constant 0 : index
    %88 = vector.load %arg12[%c0_39, %c0_40] : memref<128x32xbf16, #tpu.memory_space<vmem>>, vector<128x32xbf16>
    %cst_41 = arith.constant dense<0.000000e+00> : vector<8x32xf32>
    %89 = tpu.matmul %87, %88, %cst_41 {dimension_numbers = #tpu.dot_dimension_numbers<[1], [0], [0], [1], [0, 0, 1, 1], [], []>} : vector<8x128xbf16>, vector<128x32xbf16>, vector<8x32xf32> -> vector<8x32xf32>
    %c0_42 = arith.constant 0 : index
    %c0_43 = arith.constant 0 : index
    %90 = vector.load %arg13[%c0_42, %c0_43] : memref<1x32xf32, #tpu.memory_space<vmem>>, vector<1x32xf32>
    %91 = vector.broadcast %90 : vector<1x32xf32> to vector<8x32xf32>
    %92 = arith.addf %89, %91 : vector<8x32xf32>
    %93 = arith.addf %92, %67 : vector<8x32xf32>
    %c0_44 = arith.constant 0 : index
    %c0_45 = arith.constant 0 : index
    %94 = vector.load %arg14[%c0_44, %c0_45] : memref<1x32xf32, #tpu.memory_space<vmem>>, vector<1x32xf32>
    %c0_46 = arith.constant 0 : index
    %c0_47 = arith.constant 0 : index
    %95 = vector.load %arg15[%c0_46, %c0_47] : memref<1x32xf32, #tpu.memory_space<vmem>>, vector<1x32xf32>
    %cst_48 = arith.constant dense<0.000000e+00> : vector<8xf32>
    %96 = vector.multi_reduction <add>, %93, %cst_48 [1] : vector<8x32xf32> to vector<8xf32>
    %97 = vector.shape_cast %96 : vector<8xf32> to vector<8x1xf32>
    %cst_49 = arith.constant 3.200000e+01 : f32
    %98 = vector.broadcast %cst_49 : f32 to vector<8x1xf32>
    %99 = arith.divf %97, %98 : vector<8x1xf32>
    %100 = vector.broadcast %99 : vector<8x1xf32> to vector<8x32xf32>
    %101 = arith.subf %93, %100 : vector<8x32xf32>
    %102 = arith.mulf %101, %101 : vector<8x32xf32>
    %cst_50 = arith.constant dense<0.000000e+00> : vector<8xf32>
    %103 = vector.multi_reduction <add>, %102, %cst_50 [1] : vector<8x32xf32> to vector<8xf32>
    %104 = vector.shape_cast %103 : vector<8xf32> to vector<8x1xf32>
    %cst_51 = arith.constant 3.200000e+01 : f32
    %105 = vector.broadcast %cst_51 : f32 to vector<8x1xf32>
    %106 = arith.divf %104, %105 : vector<8x1xf32>
    %107 = vector.broadcast %99 : vector<8x1xf32> to vector<8x32xf32>
    %108 = arith.subf %93, %107 : vector<8x32xf32>
    %cst_52 = arith.constant 9.99999996E-13 : f32
    %109 = vector.broadcast %cst_52 : f32 to vector<8x1xf32>
    %110 = arith.addf %106, %109 : vector<8x1xf32>
    %111 = math.rsqrt %110 : vector<8x1xf32>
    %112 = vector.broadcast %111 : vector<8x1xf32> to vector<8x32xf32>
    %113 = arith.mulf %108, %112 : vector<8x32xf32>
    %114 = vector.broadcast %94 : vector<1x32xf32> to vector<8x32xf32>
    %115 = arith.mulf %113, %114 : vector<8x32xf32>
    %116 = vector.broadcast %95 : vector<1x32xf32> to vector<8x32xf32>
    %117 = arith.addf %115, %116 : vector<8x32xf32>
    %c0_53 = arith.constant 0 : index
    %c0_54 = arith.constant 0 : index
    %c0_55 = arith.constant 0 : index
    %118 = vector.load %arg16[%c0_53, %c0_54, %c0_55] : memref<1x8x32xf32, #tpu.memory_space<vmem>>, vector<1x8x32xf32>
    %119 = vector.shape_cast %118 : vector<1x8x32xf32> to vector<8x32xf32>
    %120 = vector.shape_cast %117 : vector<8x32xf32> to vector<1x8x32xf32>
    tpu.vector_store %arg16[%c0_53, %c0_54, %c0_55], %120 {strides = array<i32>} : memref<1x8x32xf32, #tpu.memory_space<vmem>>, vector<1x8x32xf32>,
    return
  }
  func.func @transform_0(%arg0: i32, %arg1: i32) -> (i32, i32, i32) {
    %c0_i32 = arith.constant 0 : i32
    %c0_i32_0 = arith.constant 0 : i32
    %c0_i32_1 = arith.constant 0 : i32
    return %arg0, %c0_i32, %c0_i32_0 : i32, i32, i32
  }
  func.func @transform_1(%arg0: i32, %arg1: i32) -> (i32, i32, i32) {
    %c0_i32 = arith.constant 0 : i32
    %c0_i32_0 = arith.constant 0 : i32
    %c0_i32_1 = arith.constant 0 : i32
    return %arg0, %c0_i32, %c0_i32_0 : i32, i32, i32
  }
  func.func @transform_2(%arg0: i32, %arg1: i32) -> (i32, i32) {
    %c0_i32 = arith.constant 0 : i32
    %c0_i32_0 = arith.constant 0 : i32
    %c0_i32_1 = arith.constant 0 : i32
    return %c0_i32, %c0_i32_0 : i32, i32
  }
  func.func @transform_3(%arg0: i32, %arg1: i32) -> (i32, i32) {
    %c0_i32 = arith.constant 0 : i32
    %c0_i32_0 = arith.constant 0 : i32
    %c0_i32_1 = arith.constant 0 : i32
    return %c0_i32, %c0_i32_0 : i32, i32
  }
  func.func @transform_4(%arg0: i32, %arg1: i32) -> (i32, i32) {
    %c0_i32 = arith.constant 0 : i32
    %c0_i32_0 = arith.constant 0 : i32
    %c0_i32_1 = arith.constant 0 : i32
    return %c0_i32, %c0_i32_0 : i32, i32
  }
  func.func @transform_5(%arg0: i32, %arg1: i32) -> (i32, i32) {
    %c0_i32 = arith.constant 0 : i32
    %c0_i32_0 = arith.constant 0 : i32
    %c0_i32_1 = arith.constant 0 : i32
    return %c0_i32, %c0_i32_0 : i32, i32
  }
  func.func @transform_6(%arg0: i32, %arg1: i32) -> (i32, i32) {
    %c0_i32 = arith.constant 0 : i32
    %c0_i32_0 = arith.constant 0 : i32
    %c0_i32_1 = arith.constant 0 : i32
    return %c0_i32, %c0_i32_0 : i32, i32
  }
  func.func @transform_7(%arg0: i32, %arg1: i32) -> (i32, i32) {
    %c0_i32 = arith.constant 0 : i32
    %c0_i32_0 = arith.constant 0 : i32
    %c0_i32_1 = arith.constant 0 : i32
    return %c0_i32, %c0_i32_0 : i32, i32
  }
  func.func @transform_8(%arg0: i32, %arg1: i32) -> (i32, i32) {
    %c0_i32 = arith.constant 0 : i32
    %c0_i32_0 = arith.constant 0 : i32
    %c0_i32_1 = arith.constant 0 : i32
    return %c0_i32, %c0_i32_0 : i32, i32
  }
  func.func @transform_9(%arg0: i32, %arg1: i32) -> (i32, i32) {
    %c0_i32 = arith.constant 0 : i32
    %c0_i32_0 = arith.constant 0 : i32
    %c0_i32_1 = arith.constant 0 : i32
    return %c0_i32, %c0_i32_0 : i32, i32
  }
  func.func @transform_10(%arg0: i32, %arg1: i32) -> (i32, i32) {
    %c0_i32 = arith.constant 0 : i32
    %c0_i32_0 = arith.constant 0 : i32
    %c0_i32_1 = arith.constant 0 : i32
    return %c0_i32, %c0_i32_0 : i32, i32
  }
  func.func @transform_11(%arg0: i32, %arg1: i32) -> (i32, i32) {
    %c0_i32 = arith.constant 0 : i32
    %c0_i32_0 = arith.constant 0 : i32
    %c0_i32_1 = arith.constant 0 : i32
    return %c0_i32, %c0_i32_0 : i32, i32
  }
  func.func @transform_12(%arg0: i32, %arg1: i32) -> (i32, i32) {
    %c0_i32 = arith.constant 0 : i32
    %c0_i32_0 = arith.constant 0 : i32
    %c0_i32_1 = arith.constant 0 : i32
    return %c0_i32, %c0_i32_0 : i32, i32
  }
  func.func @transform_13(%arg0: i32, %arg1: i32) -> (i32, i32) {
    %c0_i32 = arith.constant 0 : i32
    %c0_i32_0 = arith.constant 0 : i32
    %c0_i32_1 = arith.constant 0 : i32
    return %c0_i32, %c0_i32_0 : i32, i32
  }
  func.func @transform_14(%arg0: i32, %arg1: i32) -> (i32, i32, i32) {
    %c0_i32 = arith.constant 0 : i32
    %c0_i32_0 = arith.constant 0 : i32
    return %arg0, %arg1, %c0_i32 : i32, i32, i32
  }
}

</mosaic_0001>

<llo_original>
// kernel: tpu_custom_call.1
$region0: #{tpu_custom_call.1}
  #allocation0 [shape = 'u32[]', space=smem, size = 0x4, offset = 0x4, fixed_abs, tag = 'smem constant byte address 0x4 - core index']
  #allocation1 [shape = 'u32[144,128]{1,0:T(1,128)}', space=vmem, size = 0x12000, scoped, tag = 'internal scratch']
  #allocation2 [shape = 'bf16[4,8,8]{2,1,0:T(8,128)(2,1)}', space=vmem, size = 0x2000, scoped, tag = 'scratch operand']
  #allocation3 [shape = 'bf16[4,8,8]{2,1,0:T(8,128)(2,1)}', space=vmem, size = 0x2000, scoped, tag = 'scratch operand']
  #allocation4 [shape = 'bf16[4,8,8]{2,1,0:T(8,128)(2,1)}', space=vmem, size = 0x2000, scoped, tag = 'scratch operand']
  %s0 = inlined_call_operand.vmem [shape: f32[2,8,32], index: 0, kind: input, shape index: {}]
  %s1 = inlined_call_operand.vmem [shape: f32[2,1,8], index: 1, kind: input, shape index: {}]
  %s2 = inlined_call_operand.vmem [shape: bf16[32,96], index: 2, kind: input, shape index: {}]
  %s3 = inlined_call_operand.vmem [shape: f32[1,96], index: 3, kind: input, shape index: {}]
  %s4 = inlined_call_operand.vmem [shape: bf16[32,32], index: 4, kind: input, shape index: {}]
  %s5 = inlined_call_operand.vmem [shape: f32[1,32], index: 5, kind: input, shape index: {}]
  %s6 = inlined_call_operand.vmem [shape: f32[1,32], index: 6, kind: input, shape index: {}]
  %s7 = inlined_call_operand.vmem [shape: f32[1,32], index: 7, kind: input, shape index: {}]
  %s8 = inlined_call_operand.vmem [shape: bf16[32,128], index: 8, kind: input, shape index: {}]
  %s9 = inlined_call_operand.vmem [shape: f32[1,128], index: 9, kind: input, shape index: {}]
  %s10 = inlined_call_operand.vmem [shape: bf16[128,32], index: 10, kind: input, shape index: {}]
  %s11 = inlined_call_operand.vmem [shape: f32[1,32], index: 11, kind: input, shape index: {}]
  %s12 = inlined_call_operand.vmem [shape: f32[1,32], index: 12, kind: input, shape index: {}]
  %s13 = inlined_call_operand.vmem [shape: f32[1,32], index: 13, kind: input, shape index: {}]
  %s14 = inlined_call_operand.hbm [shape: f32[2,8,32], index: 14, kind: output, shape index: {}]
  %s15 = sld [smem:[#allocation0]]
  $region93: #{tpu_custom_call.1} parent=0
    _
  %s17 = ssub.s32 1, %s15
  %s18 = scalar_select 0, %s17, %s15
  $region1: #{tpu_custom_call.1} parent=0
    #allocation5 [shape = 'u8[8192]{0}', space=vmem, size = 0x2000, scoped, tag = 'output window, operand 0']
    #allocation6 [shape = 's32[2]{0}', space=sflag, size = 0x8, scoped, tag = 'scoped memory for tpu_custom_call.1']
    %19 = vsyncpa [#allocation6], 0
    %s20 = scalar_lea.sflag [#allocation6], 1
    %21 = vsyncpa %s20, 0
    loop: start=0, step=1, limit=4
    $region2: #{tpu_custom_call.1} parent=1 // loop_pre_header
      _
    $region3: #{tpu_custom_call.1} parent=1 // loop_header
      %s23 = sphi 0, %s27
      %p24 = scmp.ge.s32.totalorder %s23, 4
      %s30 = sphi 0, %s42
      %s31 = sphi 0, %s38
      %s32 = sphi 0, %s30
      %s33 = sphi 0, %s31
      %s34 = sphi 0, %s32
      %s35 = sphi 0, %s33
      %s45 = sphi 0, %s47
      %s48 = sphi 0, %s45
      %s49 = sphi 0, %s48
      %s65 = sphi 0, %s49
      %s71 = sphi 0, %s73
      %s74 = sphi 0, %s71
      %s75 = sphi 0, %s74
      %s91 = sphi 0, %s75
      %s95 = sphi 0, %s95
      %s97 = sphi 0, %s95
      %s98 = sphi 0, %s97
      %s112 = sphi 0, %s98
      %s116 = sphi 0, %s116
      %s118 = sphi 0, %s116
      %s119 = sphi 0, %s118
      %s133 = sphi 0, %s119
      %s137 = sphi 0, %s137
      %s139 = sphi 0, %s137
      %s140 = sphi 0, %s139
      %s154 = sphi 0, %s140
      %s158 = sphi 0, %s158
      %s160 = sphi 0, %s158
      %s161 = sphi 0, %s160
      %s175 = sphi 0, %s161
      %s179 = sphi 0, %s179
      %s181 = sphi 0, %s179
      %s182 = sphi 0, %s181
      %s196 = sphi 0, %s182
      %s200 = sphi 0, %s200
      %s202 = sphi 0, %s200
      %s203 = sphi 0, %s202
      %s217 = sphi 0, %s203
      %s221 = sphi 0, %s221
      %s223 = sphi 0, %s221
      %s224 = sphi 0, %s223
      %s238 = sphi 0, %s224
      %s242 = sphi 0, %s242
      %s244 = sphi 0, %s242
      %s245 = sphi 0, %s244
      %s259 = sphi 0, %s245
      %s263 = sphi 0, %s263
      %s265 = sphi 0, %s263
      %s266 = sphi 0, %s265
      %s280 = sphi 0, %s266
      %s284 = sphi 0, %s284
      %s286 = sphi 0, %s284
      %s287 = sphi 0, %s286
      %s301 = sphi 0, %s287
      %s305 = sphi 0, %s305
      %s307 = sphi 0, %s305
      %s308 = sphi 0, %s307
      %s322 = sphi 0, %s308
      %s326 = sphi 0, %s326
      %s328 = sphi 0, %s326
      %s329 = sphi 0, %s328
      %s343 = sphi 0, %s329
      %s351 = sphi 0, %s353
      %s354 = sphi 0, %s351
      %s355 = sphi 0, %s354
      %s371 = sphi 0, %s355
    $region4: #{tpu_custom_call.1} parent=1 // loop_header_branch
      %26 = sbr.rel (%p24) target = $region8
    $region5: #{tpu_custom_call.1} parent=1 // loop_body
      %s28 = ssub.s32 %s23, 1
      %s29 = ssub.s32 %s23, 2
      %s36 = sadd.s32 1, %s31
      %p37 = scmp.ge.s32.totalorder %s36, 1
      %s38 = scalar_select %p37, 0, %s36
      %s39 = sadd.s32 1, %s30
      %s40 = scalar_select %p37, %s39, %s30
      %p41 = scmp.ge.s32.totalorder %s40, 2
      %s42 = scalar_select %p41, 0, %s40
      %s43 = ssub.s32 %s30, %s42
      %p44 = scmp.eq.s32.totalorder %s43, 0
      %s46 = sadd.s32 %s45, 1
      %s47 = scalar_select %p44, %s45, %s46
      %p50 = pneg %p44
      %p51 = scmp.eq.s32.totalorder %s23, 1
      %p52 = por %p50, %p51
      %p53 = scmp.ne.s32.totalorder %s45, %s48
      %p54 = scmp.eq.s32.totalorder %s23, 0
      %p55 = por %p53, %p54
      %p56 = scmp.ne.s32.totalorder %s45, %s48
      %p57 = scmp.eq.s32.totalorder %s28, 1
      %p58 = por %p56, %p57
      %p59 = scmp.ne.s32.totalorder %s48, %s49
      %p60 = scmp.eq.s32.totalorder %s28, 0
      %p61 = por %p59, %p60
      %p62 = scmp.ne.s32.totalorder %s48, %s49
      %p63 = scmp.eq.s32.totalorder %s29, 1
      %p64 = por %p62, %p63
      %p66 = scmp.ne.s32.totalorder %s49, %s65
      %p67 = scmp.eq.s32.totalorder %s29, 0
      %p68 = por %p66, %p67
      %s69 = ssub.s32 %s30, %s42
      %p70 = scmp.eq.s32.totalorder %s69, 0
      %s72 = sadd.s32 %s71, 1
      %s73 = scalar_select %p70, %s71, %s72
      %p76 = pneg %p70
      %p77 = scmp.eq.s32.totalorder %s23, 1
      %p78 = por %p76, %p77
      %p79 = scmp.ne.s32.totalorder %s71, %s74
      %p80 = scmp.eq.s32.totalorder %s23, 0
      %p81 = por %p79, %p80
      %p82 = scmp.ne.s32.totalorder %s71, %s74
      %p83 = scmp.eq.s32.totalorder %s28, 1
      %p84 = por %p82, %p83
      %p85 = scmp.ne.s32.totalorder %s74, %s75
      %p86 = scmp.eq.s32.totalorder %s28, 0
      %p87 = por %p85, %p86
      %p88 = scmp.ne.s32.totalorder %s74, %s75
      %p89 = scmp.eq.s32.totalorder %s29, 1
      %p90 = por %p88, %p89
      %p92 = scmp.ne.s32.totalorder %s75, %s91
      %p93 = scmp.eq.s32.totalorder %s29, 0
      %p94 = por %p92, %p93
      %s96 = sadd.s32 %s95, 1
      %p99 = scmp.eq.s32.totalorder %s23, 1
      %p100 = scmp.ne.s32.totalorder %s95, %s97
      %p101 = scmp.eq.s32.totalorder %s23, 0
      %p102 = por %p100, %p101
      %p103 = scmp.ne.s32.totalorder %s95, %s97
      %p104 = scmp.eq.s32.totalorder %s28, 1
      %p105 = por %p103, %p104
      %p106 = scmp.ne.s32.totalorder %s97, %s98
      %p107 = scmp.eq.s32.totalorder %s28, 0
      %p108 = por %p106, %p107
      %p109 = scmp.ne.s32.totalorder %s97, %s98
      %p110 = scmp.eq.s32.totalorder %s29, 1
      %p111 = por %p109, %p110
      %p113 = scmp.ne.s32.totalorder %s98, %s112
      %p114 = scmp.eq.s32.totalorder %s29, 0
      %p115 = por %p113, %p114
      %s117 = sadd.s32 %s116, 1
      %p120 = scmp.eq.s32.totalorder %s23, 1
      %p121 = scmp.ne.s32.totalorder %s116, %s118
      %p122 = scmp.eq.s32.totalorder %s23, 0
      %p123 = por %p121, %p122
      %p124 = scmp.ne.s32.totalorder %s116, %s118
      %p125 = scmp.eq.s32.totalorder %s28, 1
      %p126 = por %p124, %p125
      %p127 = scmp.ne.s32.totalorder %s118, %s119
      %p128 = scmp.eq.s32.totalorder %s28, 0
      %p129 = por %p127, %p128
      %p130 = scmp.ne.s32.totalorder %s118, %s119
      %p131 = scmp.eq.s32.totalorder %s29, 1
      %p132 = por %p130, %p131
      %p134 = scmp.ne.s32.totalorder %s119, %s133
      %p135 = scmp.eq.s32.totalorder %s29, 0
      %p136 = por %p134, %p135
      %s138 = sadd.s32 %s137, 1
      %p141 = scmp.eq.s32.totalorder %s23, 1
      %p142 = scmp.ne.s32.totalorder %s137, %s139
      %p143 = scmp.eq.s32.totalorder %s23, 0
      %p144 = por %p142, %p143
      %p145 = scmp.ne.s32.totalorder %s137, %s139
      %p146 = scmp.eq.s32.totalorder %s28, 1
      %p147 = por %p145, %p146
      %p148 = scmp.ne.s32.totalorder %s139, %s140
      %p149 = scmp.eq.s32.totalorder %s28, 0
      %p150 = por %p148, %p149
      %p151 = scmp.ne.s32.totalorder %s139, %s140
      %p152 = scmp.eq.s32.totalorder %s29, 1
      %p153 = por %p151, %p152
      %p155 = scmp.ne.s32.totalorder %s140, %s154
      %p156 = scmp.eq.s32.totalorder %s29, 0
      %p157 = por %p155, %p156
      %s159 = sadd.s32 %s158, 1
      %p162 = scmp.eq.s32.totalorder %s23, 1
      %p163 = scmp.ne.s32.totalorder %s158, %s160
      %p164 = scmp.eq.s32.totalorder %s23, 0
      %p165 = por %p163, %p164
      %p166 = scmp.ne.s32.totalorder %s158, %s160
      %p167 = scmp.eq.s32.totalorder %s28, 1
      %p168 = por %p166, %p167
      %p169 = scmp.ne.s32.totalorder %s160, %s161
      %p170 = scmp.eq.s32.totalorder %s28, 0
      %p171 = por %p169, %p170
      %p172 = scmp.ne.s32.totalorder %s160, %s161
      %p173 = scmp.eq.s32.totalorder %s29, 1
      %p174 = por %p172, %p173
      %p176 = scmp.ne.s32.totalorder %s161, %s175
      %p177 = scmp.eq.s32.totalorder %s29, 0
      %p178 = por %p176, %p177
      %s180 = sadd.s32 %s179, 1
      %p183 = scmp.eq.s32.totalorder %s23, 1
      %p184 = scmp.ne.s32.totalorder %s179, %s181
      %p185 = scmp.eq.s32.totalorder %s23, 0
      %p186 = por %p184, %p185
      %p187 = scmp.ne.s32.totalorder %s179, %s181
      %p188 = scmp.eq.s32.totalorder %s28, 1
      %p189 = por %p187, %p188
      %p190 = scmp.ne.s32.totalorder %s181, %s182
      %p191 = scmp.eq.s32.totalorder %s28, 0
      %p192 = por %p190, %p191
      %p193 = scmp.ne.s32.totalorder %s181, %s182
      %p194 = scmp.eq.s32.totalorder %s29, 1
      %p195 = por %p193, %p194
      %p197 = scmp.ne.s32.totalorder %s182, %s196
      %p198 = scmp.eq.s32.totalorder %s29, 0
      %p199 = por %p197, %p198
      %s201 = sadd.s32 %s200, 1
      %p204 = scmp.eq.s32.totalorder %s23, 1
      %p205 = scmp.ne.s32.totalorder %s200, %s202
      %p206 = scmp.eq.s32.totalorder %s23, 0
      %p207 = por %p205, %p206
      %p208 = scmp.ne.s32.totalorder %s200, %s202
      %p209 = scmp.eq.s32.totalorder %s28, 1
      %p210 = por %p208, %p209
      %p211 = scmp.ne.s32.totalorder %s202, %s203
      %p212 = scmp.eq.s32.totalorder %s28, 0
      %p213 = por %p211, %p212
      %p214 = scmp.ne.s32.totalorder %s202, %s203
      %p215 = scmp.eq.s32.totalorder %s29, 1
      %p216 = por %p214, %p215
      %p218 = scmp.ne.s32.totalorder %s203, %s217
      %p219 = scmp.eq.s32.totalorder %s29, 0
      %p220 = por %p218, %p219
      %s222 = sadd.s32 %s221, 1
      %p225 = scmp.eq.s32.totalorder %s23, 1
      %p226 = scmp.ne.s32.totalorder %s221, %s223
      %p227 = scmp.eq.s32.totalorder %s23, 0
      %p228 = por %p226, %p227
      %p229 = scmp.ne.s32.totalorder %s221, %s223
      %p230 = scmp.eq.s32.totalorder %s28, 1
      %p231 = por %p229, %p230
      %p232 = scmp.ne.s32.totalorder %s223, %s224
      %p233 = scmp.eq.s32.totalorder %s28, 0
      %p234 = por %p232, %p233
      %p235 = scmp.ne.s32.totalorder %s223, %s224
      %p236 = scmp.eq.s32.totalorder %s29, 1
      %p237 = por %p235, %p236
      %p239 = scmp.ne.s32.totalorder %s224, %s238
      %p240 = scmp.eq.s32.totalorder %s29, 0
      %p241 = por %p239, %p240
      %s243 = sadd.s32 %s242, 1
      %p246 = scmp.eq.s32.totalorder %s23, 1
      %p247 = scmp.ne.s32.totalorder %s242, %s244
      %p248 = scmp.eq.s32.totalorder %s23, 0
      %p249 = por %p247, %p248
      %p250 = scmp.ne.s32.totalorder %s242, %s244
      %p251 = scmp.eq.s32.totalorder %s28, 1
      %p252 = por %p250, %p251
      %p253 = scmp.ne.s32.totalorder %s244, %s245
      %p254 = scmp.eq.s32.totalorder %s28, 0
      %p255 = por %p253, %p254
      %p256 = scmp.ne.s32.totalorder %s244, %s245
      %p257 = scmp.eq.s32.totalorder %s29, 1
      %p258 = por %p256, %p257
      %p260 = scmp.ne.s32.totalorder %s245, %s259
      %p261 = scmp.eq.s32.totalorder %s29, 0
      %p262 = por %p260, %p261
      %s264 = sadd.s32 %s263, 1
      %p267 = scmp.eq.s32.totalorder %s23, 1
      %p268 = scmp.ne.s32.totalorder %s263, %s265
      %p269 = scmp.eq.s32.totalorder %s23, 0
      %p270 = por %p268, %p269
      %p271 = scmp.ne.s32.totalorder %s263, %s265
      %p272 = scmp.eq.s32.totalorder %s28, 1
      %p273 = por %p271, %p272
      %p274 = scmp.ne.s32.totalorder %s265, %s266
      %p275 = scmp.eq.s32.totalorder %s28, 0
      %p276 = por %p274, %p275
      %p277 = scmp.ne.s32.totalorder %s265, %s266
      %p278 = scmp.eq.s32.totalorder %s29, 1
      %p279 = por %p277, %p278
      %p281 = scmp.ne.s32.totalorder %s266, %s280
      %p282 = scmp.eq.s32.totalorder %s29, 0
      %p283 = por %p281, %p282
      %s285 = sadd.s32 %s284, 1
      %p288 = scmp.eq.s32.totalorder %s23, 1
      %p289 = scmp.ne.s32.totalorder %s284, %s286
      %p290 = scmp.eq.s32.totalorder %s23, 0
      %p291 = por %p289, %p290
      %p292 = scmp.ne.s32.totalorder %s284, %s286
      %p293 = scmp.eq.s32.totalorder %s28, 1
      %p294 = por %p292, %p293
      %p295 = scmp.ne.s32.totalorder %s286, %s287
      %p296 = scmp.eq.s32.totalorder %s28, 0
      %p297 = por %p295, %p296
      %p298 = scmp.ne.s32.totalorder %s286, %s287
      %p299 = scmp.eq.s32.totalorder %s29, 1
      %p300 = por %p298, %p299
      %p302 = scmp.ne.s32.totalorder %s287, %s301
      %p303 = scmp.eq.s32.totalorder %s29, 0
      %p304 = por %p302, %p303
      %s306 = sadd.s32 %s305, 1
      %p309 = scmp.eq.s32.totalorder %s23, 1
      %p310 = scmp.ne.s32.totalorder %s305, %s307
      %p311 = scmp.eq.s32.totalorder %s23, 0
      %p312 = por %p310, %p311
      %p313 = scmp.ne.s32.totalorder %s305, %s307
      %p314 = scmp.eq.s32.totalorder %s28, 1
      %p315 = por %p313, %p314
      %p316 = scmp.ne.s32.totalorder %s307, %s308
      %p317 = scmp.eq.s32.totalorder %s28, 0
      %p318 = por %p316, %p317
      %p319 = scmp.ne.s32.totalorder %s307, %s308
      %p320 = scmp.eq.s32.totalorder %s29, 1
      %p321 = por %p319, %p320
      %p323 = scmp.ne.s32.totalorder %s308, %s322
      %p324 = scmp.eq.s32.totalorder %s29, 0
      %p325 = por %p323, %p324
      %s327 = sadd.s32 %s326, 1
      %p330 = scmp.eq.s32.totalorder %s23, 1
      %p331 = scmp.ne.s32.totalorder %s326, %s328
      %p332 = scmp.eq.s32.totalorder %s23, 0
      %p333 = por %p331, %p332
      %p334 = scmp.ne.s32.totalorder %s326, %s328
      %p335 = scmp.eq.s32.totalorder %s28, 1
      %p336 = por %p334, %p335
      %p337 = scmp.ne.s32.totalorder %s328, %s329
      %p338 = scmp.eq.s32.totalorder %s28, 0
      %p339 = por %p337, %p338
      %p340 = scmp.ne.s32.totalorder %s328, %s329
      %p341 = scmp.eq.s32.totalorder %s29, 1
      %p342 = por %p340, %p341
      %p344 = scmp.ne.s32.totalorder %s329, %s343
      %p345 = scmp.eq.s32.totalorder %s29, 0
      %p346 = por %p344, %p345
      %s347 = ssub.s32 %s30, %s42
      %s348 = ssub.s32 %s31, %s38
      %s349 = sor.u32 %s347, %s348
      %p350 = scmp.eq.s32.totalorder %s349, 0
      %s352 = sadd.s32 %s351, 1
      %s353 = scalar_select %p350, %s351, %s352
      %p356 = pneg %p350
      %p357 = scmp.eq.s32.totalorder %s23, 1
      %p358 = por %p356, %p357
      %p359 = scmp.ne.s32.totalorder %s351, %s354
      %p360 = scmp.eq.s32.totalorder %s23, 0
      %p361 = por %p359, %p360
      %p362 = scmp.ne.s32.totalorder %s351, %s354
      %p363 = scmp.eq.s32.totalorder %s28, 1
      %p364 = por %p362, %p363
      %p365 = scmp.ne.s32.totalorder %s354, %s355
      %p366 = scmp.eq.s32.totalorder %s28, 0
      %p367 = por %p365, %p366
      %p368 = scmp.ne.s32.totalorder %s354, %s355
      %p369 = scmp.eq.s32.totalorder %s29, 1
      %p370 = por %p368, %p369
      %p372 = scmp.ne.s32.totalorder %s355, %s371
      %p373 = scmp.eq.s32.totalorder %s29, 0
      %p374 = por %p372, %p373
      %p375 = scmp.le.s32.totalorder 1, %s23
      %p376 = scmp.lt.s32.totalorder %s23, 3
      %p377 = pnand %p375, %p376
      %p378 = pneg %p377
      // Predicated region
      $region9: #{tpu_custom_call.1} parent=5 // pred_check
        _
      $region10: #{tpu_custom_call.1} parent=5 // pred_check_branch
        %380 = sbr.rel (%p377) target = $region12
      $region11: #{tpu_custom_call.1} parent=5 // pred_region
        %s381 = ssub.s32 %s23, 1
        // Predicated region
        $region13: #{tpu_custom_call.1} parent=11 // pred_check
          %p382 = pneg %p108
        $region14: #{tpu_custom_call.1} parent=11 // pred_check_branch
          %384 = sbr.rel (%p382) target = $region16
        $region15: #{tpu_custom_call.1} parent=11 // pred_region
          _
        $region16: #{tpu_custom_call.1} parent=11 // pred_fallthru
          _
        // Predicated region
        $region17: #{tpu_custom_call.1} parent=11 // pred_check
          %p385 = pneg %p129
        $region18: #{tpu_custom_call.1} parent=11 // pred_check_branch
          %387 = sbr.rel (%p385) target = $region20
        $region19: #{tpu_custom_call.1} parent=11 // pred_region
          _
        $region20: #{tpu_custom_call.1} parent=11 // pred_fallthru
          _
        // Predicated region
        $region21: #{tpu_custom_call.1} parent=11 // pred_check
          %p388 = pneg %p150
        $region22: #{tpu_custom_call.1} parent=11 // pred_check_branch
          %390 = sbr.rel (%p388) target = $region24
        $region23: #{tpu_custom_call.1} parent=11 // pred_region
          _
        $region24: #{tpu_custom_call.1} parent=11 // pred_fallthru
          _
        // Predicated region
        $region25: #{tpu_custom_call.1} parent=11 // pred_check
          %p391 = pneg %p171
        $region26: #{tpu_custom_call.1} parent=11 // pred_check_branch
          %393 = sbr.rel (%p391) target = $region28
        $region27: #{tpu_custom_call.1} parent=11 // pred_region
          _
        $region28: #{tpu_custom_call.1} parent=11 // pred_fallthru
          _
        // Predicated region
        $region29: #{tpu_custom_call.1} parent=11 // pred_check
          %p394 = pneg %p192
        $region30: #{tpu_custom_call.1} parent=11 // pred_check_branch
          %396 = sbr.rel (%p394) target = $region32
        $region31: #{tpu_custom_call.1} parent=11 // pred_region
          _
        $region32: #{tpu_custom_call.1} parent=11 // pred_fallthru
          _
        // Predicated region
        $region33: #{tpu_custom_call.1} parent=11 // pred_check
          %p397 = pneg %p213
        $region34: #{tpu_custom_call.1} parent=11 // pred_check_branch
          %399 = sbr.rel (%p397) target = $region36
        $region35: #{tpu_custom_call.1} parent=11 // pred_region
          _
        $region36: #{tpu_custom_call.1} parent=11 // pred_fallthru
          _
        // Predicated region
        $region37: #{tpu_custom_call.1} parent=11 // pred_check
          %p400 = pneg %p234
        $region38: #{tpu_custom_call.1} parent=11 // pred_check_branch
          %402 = sbr.rel (%p400) target = $region40
        $region39: #{tpu_custom_call.1} parent=11 // pred_region
          _
        $region40: #{tpu_custom_call.1} parent=11 // pred_fallthru
          _
        // Predicated region
        $region41: #{tpu_custom_call.1} parent=11 // pred_check
          %p403 = pneg %p255
        $region42: #{tpu_custom_call.1} parent=11 // pred_check_branch
          %405 = sbr.rel (%p403) target = $region44
        $region43: #{tpu_custom_call.1} parent=11 // pred_region
          _
        $region44: #{tpu_custom_call.1} parent=11 // pred_fallthru
          _
        // Predicated region
        $region45: #{tpu_custom_call.1} parent=11 // pred_check
          %p406 = pneg %p276
        $region46: #{tpu_custom_call.1} parent=11 // pred_check_branch
          %408 = sbr.rel (%p406) target = $region48
        $region47: #{tpu_custom_call.1} parent=11 // pred_region
          _
        $region48: #{tpu_custom_call.1} parent=11 // pred_fallthru
          _
        // Predicated region
        $region49: #{tpu_custom_call.1} parent=11 // pred_check
          %p409 = pneg %p297
        $region50: #{tpu_custom_call.1} parent=11 // pred_check_branch
          %411 = sbr.rel (%p409) target = $region52
        $region51: #{tpu_custom_call.1} parent=11 // pred_region
          _
        $region52: #{tpu_custom_call.1} parent=11 // pred_fallthru
          _
        // Predicated region
        $region53: #{tpu_custom_call.1} parent=11 // pred_check
          %p412 = pneg %p318
        $region54: #{tpu_custom_call.1} parent=11 // pred_check_branch
          %414 = sbr.rel (%p412) target = $region56
        $region55: #{tpu_custom_call.1} parent=11 // pred_region
          _
        $region56: #{tpu_custom_call.1} parent=11 // pred_fallthru
          _
        // Predicated region
        $region57: #{tpu_custom_call.1} parent=11 // pred_check
          %p415 = pneg %p339
        $region58: #{tpu_custom_call.1} parent=11 // pred_check_branch
          %417 = sbr.rel (%p415) target = $region60
        $region59: #{tpu_custom_call.1} parent=11 // pred_region
          _
        $region60: #{tpu_custom_call.1} parent=11 // pred_fallthru
          _
      $region12: #{tpu_custom_call.1} parent=5 // pred_fallthru
        _
      %p418 = scmp.lt.s32.totalorder %s23, 2
      // Predicated region
      $region61: #{tpu_custom_call.1} parent=5 // pred_check
        %p419 = pneg %p418
      $region62: #{tpu_custom_call.1} parent=5 // pred_check_branch
        %421 = sbr.rel (%p419) target = $region64
      $region63: #{tpu_custom_call.1} parent=5 // pred_region
        // Predicated region
        $region65: #{tpu_custom_call.1} parent=63 // pred_check
          %p422 = pneg %p55
        $region66: #{tpu_custom_call.1} parent=63 // pred_check_branch
          %424 = sbr.rel (%p422) target = $region68
        $region67: #{tpu_custom_call.1} parent=63 // pred_region
          %p425 = scmp.lt.s32.totalorder %s30, 1
          %s426 = scalar_select %p425, %s30, 1
          %s427 = smul.addr %s426, 8
          %s428 = scalar_lea.vmem %s0, %s427
        $region68: #{tpu_custom_call.1} parent=63 // pred_fallthru
          _
        // Predicated region
        $region69: #{tpu_custom_call.1} parent=63 // pred_check
          %p429 = pneg %p81
        $region70: #{tpu_custom_call.1} parent=63 // pred_check_branch
          %431 = sbr.rel (%p429) target = $region72
        $region71: #{tpu_custom_call.1} parent=63 // pred_region
          %p432 = scmp.lt.s32.totalorder %s30, 1
          %s433 = scalar_select %p432, %s30, 1
          %s434 = scalar_lea.vmem %s1, %s433
        $region72: #{tpu_custom_call.1} parent=63 // pred_fallthru
          _
      $region64: #{tpu_custom_call.1} parent=5 // pred_fallthru
        _
      %p435 = scmp.le.s32.totalorder 1, %s23
      %p436 = scmp.lt.s32.totalorder %s23, 3
      %p437 = pnand %p435, %p436
      %p438 = pneg %p437
      // Predicated region
      $region73: #{tpu_custom_call.1} parent=5 // pred_check
        _
      $region74: #{tpu_custom_call.1} parent=5 // pred_check_branch
        %440 = sbr.rel (%p437) target = $region76
      $region75: #{tpu_custom_call.1} parent=5 // pred_region
        %s441 = ssub.s32 %s23, 1
        %p442 = scmp.lt.s32.totalorder %s32, 1
        %s443 = scalar_select %p442, %s32, 1
        %s444 = smul.addr %s443, 8
        %s445 = scalar_lea.vmem %s0, %s444
        %p446 = pneg %p61
        %p447 = pneg %p58
        %p448 = scmp.lt.s32.totalorder %s32, 1
        %s449 = scalar_select %p448, %s32, 1
        %s450 = scalar_lea.vmem %s1, %s449
        %p451 = pneg %p87
        %p452 = pneg %p84
        %p453 = pneg %p108
        %p454 = pneg %p105
        %p455 = pneg %p129
        %p456 = pneg %p126
        %p457 = pneg %p150
        %p458 = pneg %p147
        %p459 = pneg %p171
        %p460 = pneg %p168
        %p461 = pneg %p192
        %p462 = pneg %p189
        %p463 = pneg %p213
        %p464 = pneg %p210
        %p465 = pneg %p234
        %p466 = pneg %p231
        %p467 = pneg %p255
        %p468 = pneg %p252
        %p469 = pneg %p276
        %p470 = pneg %p273
        %p471 = pneg %p297
        %p472 = pneg %p294
        %p473 = pneg %p318
        %p474 = pneg %p315
        %p475 = pneg %p339
        %p476 = pneg %p336
        %p477 = pneg %p367
        %p478 = pneg %p364
        %s479 = sand.u32 %s354, 1
        %s480 = scalar_lea.sflag [#allocation6], %s479
        %s481 = sand.u32 %s354, 1
        %s482 = smul.addr %s481, 8
        %s483 = scalar_lea.vmem [#allocation5], %s482
        %p484 = scmp.lt.s32.totalorder %s32, 1
        %s485 = scalar_select %p484, %s32, 1
        %s486 = smul.addr %s485, 8
        %s487 = scalar_lea.vmem %s0, %s486
        %p488 = scmp.lt.s32.totalorder %s32, 1
        %s489 = scalar_select %p488, %s32, 1
        %s490 = scalar_lea.vmem %s1, %s489
        %p492 = scmp.eq.s32.totalorder %s33, 0
        // Predicated region
        $region77: #{tpu_custom_call.1} parent=75 // pred_check
          %p493 = pneg %p492
        $region78: #{tpu_custom_call.1} parent=75 // pred_check_branch
          %495 = sbr.rel (%p493) target = $region80
        $region79: #{tpu_custom_call.1} parent=75 // pred_region
          %v496 = vld [vmem:[%s487] sm:$0xff]
          %v497 = vpack.c.bf16 %v496, %v496
          %v498 = vld [vmem:[%s2] sm:$0xf]
          %v499 = vld [vmem:[%s2 + $0x4] sm:$0xf]
          %v500 = vld [vmem:[%s2 + $0x8] sm:$0xf]
          %v501 = vld [vmem:[%s2 + $0xc] sm:$0xf]
          %v502 = vld [vmem:[%s3] sm:$0x1]
          %v504 = vlaneseq
          %v505 = vshrl.u32 %v504, 7
          %v506 = vsub.s32 0, %v505
          %v507 = vrot.slane %v502, %v506
          %v513 = vunpack.c.l.b16 %v498
          %v514 = vunpack.c.l.b16 %v499
          %v515 = vunpack.c.l.b16 %v500
          %v516 = vunpack.c.l.b16 %v501
          %v517 = vpack.c.b16 %v514, %v513
          %v518 = vpack.c.b16 %v516, %v515
          %vm521 = vcmask 261120
          %v523 = vsel %vm521, %v497, 0
          %525 = vmatprep.subr.bf16.mxu0 0
          %526 = vmatpush1.bf16.msra.mxu0 %v517
          %527 = vmatprep.subr.bf16.mxu0 0
          %528 = vmatpush1.bf16.msra.mxu0 %v518
          %529 = vmatprep.subr.bf16.mxu0 0
          %530 = vmatpush1.bf16.msra.mxu0 0
          %531 = vmatprep.subr.bf16.mxu0 0
          %532 = vmatpush1.bf16.msra.mxu0 0
          %533 = vmatprep.subr.bf16.mxu0 0
          %534 = vmatpush1.bf16.msra.mxu0 0
          %535 = vmatprep.subr.bf16.mxu0 0
          %536 = vmatpush1.bf16.msra.mxu0 0
          %537 = vmatprep.subr.bf16.mxu0 0
          %538 = vmatpush1.bf16.msra.mxu0 0
          %539 = vmatprep.subr.bf16.mxu0 0
          %540 = vmatpush1.bf16.msra.mxu0 0
          %541 = vmatprep.subr.bf16.mxu0 0
          %542 = vmatpush1.bf16.msra.mxu0 0
          %543 = vmatprep.subr.bf16.mxu0 0
          %544 = vmatpush1.bf16.msra.mxu0 0
          %545 = vmatprep.subr.bf16.mxu0 0
          %546 = vmatpush1.bf16.msra.mxu0 0
          %547 = vmatprep.subr.bf16.mxu0 0
          %548 = vmatpush1.bf16.msra.mxu0 0
          %549 = vmatprep.subr.bf16.mxu0 0
          %550 = vmatpush1.bf16.msra.mxu0 0
          %551 = vmatprep.subr.bf16.mxu0 0
          %552 = vmatpush1.bf16.msra.mxu0 0
          %553 = vmatprep.subr.bf16.mxu0 0
          %554 = vmatpush1.bf16.msra.mxu0 0
          %555 = vmatprep.subr.bf16.mxu0 0
          %556 = vmatpush1.bf16.msra.mxu0 0
          %557 = vmatprep.mubr.bf16.mxu0 0
          %558 = vmatmul.mubr.bf16.gmra.mrb[0].mxu0 %v523
          %v559 = vpop.f32.mrb[0].mxu0
          %v560 = vadd.f32 %v507, %v559
          %v561 = vpop.f32.mrb[0].mxu0
          %v562 = vpop.f32.mrb[0].mxu0
          %v563 = vpop.f32.mrb[0].mxu0
          %564 = vdwg.mxu0
          %v565 = vpack.c.bf16 %v560, %v560
          %vm566 = vcmask 60416
          %567 = vst.msk [vmem:[#allocation2] sm:$0xf] %vm566, %v565
          %v569 = vunpack.c.l.b16 %v565
          %v570 = vpack.c.b16 %v569, %v569
          %571 = vrot.lane.b32.xlu0 %v570, 96
          %v572 = vpop.permute.xlu0 %571
          %574 = vst.msk [vmem:[#allocation3] sm:$0xf] %vm566, %v572
          %575 = vrot.lane.b32.xlu0 %v570, 64
          %v576 = vpop.permute.xlu0 %575
          %578 = vst.msk [vmem:[#allocation4] sm:$0xf] %vm566, %v576
          %579 = vrot.lane.b32.xlu0 %v570, 120
          %v580 = vpop.permute.xlu0 %579
          %s582 = scalar_lea.vmem [#allocation2], 4
          %583 = vst.msk [vmem:[%s582] sm:$0xf] %vm566, %v580
          %584 = vrot.lane.b32.xlu0 %v570, 88
          %v585 = vpop.permute.xlu0 %584
          %s587 = scalar_lea.vmem [#allocation3], 4
          %588 = vst.msk [vmem:[%s587] sm:$0xf] %vm566, %v585
          %589 = vrot.lane.b32.xlu0 %v570, 56
          %v590 = vpop.permute.xlu0 %589
          %s592 = scalar_lea.vmem [#allocation4], 4
          %593 = vst.msk [vmem:[%s592] sm:$0xf] %vm566, %v590
          %594 = vrot.lane.b32.xlu0 %v570, 112
          %v595 = vpop.permute.xlu0 %594
          %s597 = scalar_lea.vmem [#allocation2], 8
          %598 = vst.msk [vmem:[%s597] sm:$0xf] %vm566, %v595
          %599 = vrot.lane.b32.xlu0 %v570, 80
          %v600 = vpop.permute.xlu0 %599
          %s602 = scalar_lea.vmem [#allocation3], 8
          %603 = vst.msk [vmem:[%s602] sm:$0xf] %vm566, %v600
          %604 = vrot.lane.b32.xlu0 %v570, 48
          %v605 = vpop.permute.xlu0 %604
          %s607 = scalar_lea.vmem [#allocation4], 8
          %608 = vst.msk [vmem:[%s607] sm:$0xf] %vm566, %v605
          %609 = vrot.lane.b32.xlu0 %v570, 104
          %v610 = vpop.permute.xlu0 %609
          %s612 = scalar_lea.vmem [#allocation2], 12
          %613 = vst.msk [vmem:[%s612] sm:$0xf] %vm566, %v610
          %614 = vrot.lane.b32.xlu0 %v570, 72
          %v615 = vpop.permute.xlu0 %614
          %s617 = scalar_lea.vmem [#allocation3], 12
          %618 = vst.msk [vmem:[%s617] sm:$0xf] %vm566, %v615
          %619 = vrot.lane.b32.xlu0 %v570, 40
          %v620 = vpop.permute.xlu0 %619
          %s622 = scalar_lea.vmem [#allocation4], 12
          %623 = vst.msk [vmem:[%s622] sm:$0xf] %vm566, %v620
        $region80: #{tpu_custom_call.1} parent=75 // pred_fallthru
          _
        %s624 = smul.u32 %s33, 8
        %s625 = sshra.s32 %s624, 3
        %s626 = sand.u32 %s624, 7
        %s627 = smul.addr %s625, 4
        %s628 = scalar_lea.vmem [#allocation2], %s627
        %v629 = vld [vmem:[%s628] sm:$0xf]
        %v630 = vld [vmem:[%s628 + $0x4] sm:$0xf]
        %v631 = vld [vmem:[%s628 + $0x8] sm:$0xf]
        %v632 = vld [vmem:[%s628 + $0xc] sm:$0xf]
        %v633 = vld [vmem:[#allocation3] sm:$0xf]
        %v634 = vld [vmem:[#allocation3 + $0x4] sm:$0xf]
        %v635 = vld [vmem:[#allocation3 + $0x8] sm:$0xf]
        %v636 = vld [vmem:[#allocation3 + $0xc] sm:$0xf]
        %v637 = vld [vmem:[%s490] sm:$0x1]
        %v639 = vlaneseq
        %v640 = vshrl.u32 %v639, 7
        %v641 = vsub.s32 0, %v640
        %v642 = vrot.slane %v637, %v641
        %vm644 = vcmask 64512
        %v646 = vsel %vm644, %v629, 0
        %v649 = vsel %vm644, %v633, 0
        %651 = vmatprep.subr.bf16.mxu0 0
        %652 = vmatpush1.bf16.xpose.msra.mxu0 %v649
        %653 = vmatprep.subr.bf16.mxu0 0
        %654 = vmatpush1.bf16.xpose.msra.mxu0 0
        %655 = vmatprep.subr.bf16.mxu0 0
        %656 = vmatpush1.bf16.xpose.msra.mxu0 0
        %657 = vmatprep.subr.bf16.mxu0 0
        %658 = vmatpush1.bf16.xpose.msra.mxu0 0
        %659 = vmatprep.subr.bf16.mxu0 0
        %660 = vmatpush1.bf16.xpose.msra.mxu0 0
        %661 = vmatprep.subr.bf16.mxu0 0
        %662 = vmatpush1.bf16.xpose.msra.mxu0 0
        %663 = vmatprep.subr.bf16.mxu0 0
        %664 = vmatpush1.bf16.xpose.msra.mxu0 0
        %665 = vmatprep.subr.bf16.mxu0 0
        %666 = vmatpush1.bf16.xpose.msra.mxu0 0
        %667 = vmatprep.subr.bf16.mxu0 0
        %668 = vmatpush1.bf16.xpose.msra.mxu0 0
        %669 = vmatprep.subr.bf16.mxu0 0
        %670 = vmatpush1.bf16.xpose.msra.mxu0 0
        %671 = vmatprep.subr.bf16.mxu0 0
        %672 = vmatpush1.bf16.xpose.msra.mxu0 0
        %673 = vmatprep.subr.bf16.mxu0 0
        %674 = vmatpush1.bf16.xpose.msra.mxu0 0
        %675 = vmatprep.subr.bf16.mxu0 0
        %676 = vmatpush1.bf16.xpose.msra.mxu0 0
        %677 = vmatprep.subr.bf16.mxu0 0
        %678 = vmatpush1.bf16.xpose.msra.mxu0 0
        %679 = vmatprep.subr.bf16.mxu0 0
        %680 = vmatpush1.bf16.xpose.msra.mxu0 0
        %681 = vmatprep.subr.bf16.mxu0 0
        %682 = vmatpush1.bf16.xpose.msra.mxu0 0
        %683 = vmatprep.mubr.bf16.mxu0 0
        %684 = vmatmul.mubr.bf16.gmra.mrb[0].mxu0 %v646
        %v685 = vpop.f32.mrb[0].mxu0
        %v686 = vadd.f32 %v642, %v685
        %v687 = vpop.f32.mrb[0].mxu0
        %v688 = vpop.f32.mrb[0].mxu0
        %v689 = vpop.f32.mrb[0].mxu0
        %690 = vdwg.mxu0
        %v692 = vsel %vm644, %v630, 0
        %v695 = vsel %vm644, %v634, 0
        %697 = vmatprep.subr.bf16.mxu0 0
        %698 = vmatpush1.bf16.xpose.msra.mxu0 %v695
        %699 = vmatprep.subr.bf16.mxu0 0
        %700 = vmatpush1.bf16.xpose.msra.mxu0 0
        %701 = vmatprep.subr.bf16.mxu0 0
        %702 = vmatpush1.bf16.xpose.msra.mxu0 0
        %703 = vmatprep.subr.bf16.mxu0 0
        %704 = vmatpush1.bf16.xpose.msra.mxu0 0
        %705 = vmatprep.subr.bf16.mxu0 0
        %706 = vmatpush1.bf16.xpose.msra.mxu0 0
        %707 = vmatprep.subr.bf16.mxu0 0
        %708 = vmatpush1.bf16.xpose.msra.mxu0 0
        %709 = vmatprep.subr.bf16.mxu0 0
        %710 = vmatpush1.bf16.xpose.msra.mxu0 0
        %711 = vmatprep.subr.bf16.mxu0 0
        %712 = vmatpush1.bf16.xpose.msra.mxu0 0
        %713 = vmatprep.subr.bf16.mxu0 0
        %714 = vmatpush1.bf16.xpose.msra.mxu0 0
        %715 = vmatprep.subr.bf16.mxu0 0
        %716 = vmatpush1.bf16.xpose.msra.mxu0 0
        %717 = vmatprep.subr.bf16.mxu0 0
        %718 = vmatpush1.bf16.xpose.msra.mxu0 0
        %719 = vmatprep.subr.bf16.mxu0 0
        %720 = vmatpush1.bf16.xpose.msra.mxu0 0
        %721 = vmatprep.subr.bf16.mxu0 0
        %722 = vmatpush1.bf16.xpose.msra.mxu0 0
        %723 = vmatprep.subr.bf16.mxu0 0
        %724 = vmatpush1.bf16.xpose.msra.mxu0 0
        %725 = vmatprep.subr.bf16.mxu0 0
        %726 = vmatpush1.bf16.xpose.msra.mxu0 0
        %727 = vmatprep.subr.bf16.mxu0 0
        %728 = vmatpush1.bf16.xpose.msra.mxu0 0
        %729 = vmatprep.mubr.bf16.mxu0 0
        %730 = vmatmul.mubr.bf16.gmra.mrb[0].mxu0 %v692
        %v731 = vpop.f32.mrb[0].mxu0
        %v732 = vadd.f32 %v642, %v731
        %v733 = vpop.f32.mrb[0].mxu0
        %v734 = vpop.f32.mrb[0].mxu0
        %v735 = vpop.f32.mrb[0].mxu0
        %736 = vdwg.mxu0
        %v738 = vsel %vm644, %v631, 0
        %v741 = vsel %vm644, %v635, 0
        %743 = vmatprep.subr.bf16.mxu0 0
        %744 = vmatpush1.bf16.xpose.msra.mxu0 %v741
        %745 = vmatprep.subr.bf16.mxu0 0
        %746 = vmatpush1.bf16.xpose.msra.mxu0 0
        %747 = vmatprep.subr.bf16.mxu0 0
        %748 = vmatpush1.bf16.xpose.msra.mxu0 0
        %749 = vmatprep.subr.bf16.mxu0 0
        %750 = vmatpush1.bf16.xpose.msra.mxu0 0
        %751 = vmatprep.subr.bf16.mxu0 0
        %752 = vmatpush1.bf16.xpose.msra.mxu0 0
        %753 = vmatprep.subr.bf16.mxu0 0
        %754 = vmatpush1.bf16.xpose.msra.mxu0 0
        %755 = vmatprep.subr.bf16.mxu0 0
        %756 = vmatpush1.bf16.xpose.msra.mxu0 0
        %757 = vmatprep.subr.bf16.mxu0 0
        %758 = vmatpush1.bf16.xpose.msra.mxu0 0
        %759 = vmatprep.subr.bf16.mxu0 0
        %760 = vmatpush1.bf16.xpose.msra.mxu0 0
        %761 = vmatprep.subr.bf16.mxu0 0
        %762 = vmatpush1.bf16.xpose.msra.mxu0 0
        %763 = vmatprep.subr.bf16.mxu0 0
        %764 = vmatpush1.bf16.xpose.msra.mxu0 0
        %765 = vmatprep.subr.bf16.mxu0 0
        %766 = vmatpush1.bf16.xpose.msra.mxu0 0
        %767 = vmatprep.subr.bf16.mxu0 0
        %768 = vmatpush1.bf16.xpose.msra.mxu0 0
        %769 = vmatprep.subr.bf16.mxu0 0
        %770 = vmatpush1.bf16.xpose.msra.mxu0 0
        %771 = vmatprep.subr.bf16.mxu0 0
        %772 = vmatpush1.bf16.xpose.msra.mxu0 0
        %773 = vmatprep.subr.bf16.mxu0 0
        %774 = vmatpush1.bf16.xpose.msra.mxu0 0
        %775 = vmatprep.mubr.bf16.mxu0 0
        %776 = vmatmul.mubr.bf16.gmra.mrb[0].mxu0 %v738
        %v777 = vpop.f32.mrb[0].mxu0
        %v778 = vadd.f32 %v642, %v777
        %v779 = vpop.f32.mrb[0].mxu0
        %v780 = vpop.f32.mrb[0].mxu0
        %v781 = vpop.f32.mrb[0].mxu0
        %782 = vdwg.mxu0
        %v784 = vsel %vm644, %v632, 0
        %v787 = vsel %vm644, %v636, 0
        %789 = vmatprep.subr.bf16.mxu0 0
        %790 = vmatpush1.bf16.xpose.msra.mxu0 %v787
        %791 = vmatprep.subr.bf16.mxu0 0
        %792 = vmatpush1.bf16.xpose.msra.mxu0 0
        %793 = vmatprep.subr.bf16.mxu0 0
        %794 = vmatpush1.bf16.xpose.msra.mxu0 0
        %795 = vmatprep.subr.bf16.mxu0 0
        %796 = vmatpush1.bf16.xpose.msra.mxu0 0
        %797 = vmatprep.subr.bf16.mxu0 0
        %798 = vmatpush1.bf16.xpose.msra.mxu0 0
        %799 = vmatprep.subr.bf16.mxu0 0
        %800 = vmatpush1.bf16.xpose.msra.mxu0 0
        %801 = vmatprep.subr.bf16.mxu0 0
        %802 = vmatpush1.bf16.xpose.msra.mxu0 0
        %803 = vmatprep.subr.bf16.mxu0 0
        %804 = vmatpush1.bf16.xpose.msra.mxu0 0
        %805 = vmatprep.subr.bf16.mxu0 0
        %806 = vmatpush1.bf16.xpose.msra.mxu0 0
        %807 = vmatprep.subr.bf16.mxu0 0
        %808 = vmatpush1.bf16.xpose.msra.mxu0 0
        %809 = vmatprep.subr.bf16.mxu0 0
        %810 = vmatpush1.bf16.xpose.msra.mxu0 0
        %811 = vmatprep.subr.bf16.mxu0 0
        %812 = vmatpush1.bf16.xpose.msra.mxu0 0
        %813 = vmatprep.subr.bf16.mxu0 0
        %814 = vmatpush1.bf16.xpose.msra.mxu0 0
        %815 = vmatprep.subr.bf16.mxu0 0
        %816 = vmatpush1.bf16.xpose.msra.mxu0 0
        %817 = vmatprep.subr.bf16.mxu0 0
        %818 = vmatpush1.bf16.xpose.msra.mxu0 0
        %819 = vmatprep.subr.bf16.mxu0 0
        %820 = vmatpush1.bf16.xpose.msra.mxu0 0
        %821 = vmatprep.mubr.bf16.mxu0 0
        %822 = vmatmul.mubr.bf16.gmra.mrb[0].mxu0 %v784
        %v823 = vpop.f32.mrb[0].mxu0
        %v824 = vadd.f32 %v642, %v823
        %v825 = vpop.f32.mrb[0].mxu0
        %v826 = vpop.f32.mrb[0].mxu0
        %v827 = vpop.f32.mrb[0].mxu0
        %828 = vdwg.mxu0
        %v829 = vsel %vm644, %v686, -inf
        %830 = vmax.xlane.f32.xlu0 %v829
        %v831 = vpop.xlane.xlu0 %830
        %v832 = vsel %vm644, %v732, -inf
        %833 = vmax.xlane.f32.xlu0 %v832
        %v834 = vpop.xlane.xlu0 %833
        %v835 = vsel %vm644, %v778, -inf
        %836 = vmax.xlane.f32.xlu0 %v835
        %v837 = vpop.xlane.xlu0 %836
        %v838 = vsel %vm644, %v824, -inf
        %839 = vmax.xlane.f32.xlu0 %v838
        %v840 = vpop.xlane.xlu0 %839
        %v841 = vsub.f32 %v686, %v831
        %v842 = vsub.f32 %v732, %v834
        %v843 = vsub.f32 %v778, %v837
        %v844 = vsub.f32 %v824, %v840
        %v845 = vmul.f32 %v841, 1.442695
        %v846 = vpow.pop %v845
        %v847 = vmul.f32 %v842, 1.442695
        %v848 = vpow.pop %v847
        %v849 = vmul.f32 %v843, 1.442695
        %v850 = vpow.pop %v849
        %v851 = vmul.f32 %v844, 1.442695
        %v852 = vpow.pop %v851
        %v853 = vsel %vm644, %v846, 0.0
        %854 = vadd.xlane.f32.xlu0 %v853
        %v855 = vpop.xlane.xlu0 %854
        %v856 = vsel %vm644, %v848, 0.0
        %857 = vadd.xlane.f32.xlu0 %v856
        %v858 = vpop.xlane.xlu0 %857
        %v859 = vsel %vm644, %v850, 0.0
        %860 = vadd.xlane.f32.xlu0 %v859
        %v861 = vpop.xlane.xlu0 %860
        %v862 = vsel %vm644, %v852, 0.0
        %863 = vadd.xlane.f32.xlu0 %v862
        %v864 = vpop.xlane.xlu0 %863
        %v865 = vrcp.pop %v855
        %v866 = vrcp.pop %v858
        %v867 = vrcp.pop %v861
        %v868 = vrcp.pop %v864
        %v869 = vmul.f32 %v846, %v865
        %v870 = vmul.f32 %v848, %v866
        %v871 = vmul.f32 %v850, %v867
        %v872 = vmul.f32 %v852, %v868
        %v873 = vpack.c.bf16 %v869, %v869
        %v874 = vpack.c.bf16 %v870, %v870
        %v875 = vpack.c.bf16 %v871, %v871
        %v876 = vpack.c.bf16 %v872, %v872
        %v877 = vld [vmem:[#allocation4] sm:$0xf]
        %v878 = vld [vmem:[#allocation4 + $0x4] sm:$0xf]
        %v879 = vld [vmem:[#allocation4 + $0x8] sm:$0xf]
        %v880 = vld [vmem:[#allocation4 + $0xc] sm:$0xf]
        %v882 = vsel %vm644, %v873, 0
        %vm884 = vcmask 1043456
        %v886 = vsel %vm884, %v877, 0
        %888 = vmatprep.subr.bf16.mxu0 0
        %889 = vmatpush1.bf16.msra.mxu0 %v886
        %890 = vmatprep.subr.bf16.mxu0 0
        %891 = vmatpush1.bf16.msra.mxu0 0
        %892 = vmatprep.subr.bf16.mxu0 0
        %893 = vmatpush1.bf16.msra.mxu0 0
        %894 = vmatprep.subr.bf16.mxu0 0
        %895 = vmatpush1.bf16.msra.mxu0 0
        %896 = vmatprep.subr.bf16.mxu0 0
        %897 = vmatpush1.bf16.msra.mxu0 0
        %898 = vmatprep.subr.bf16.mxu0 0
        %899 = vmatpush1.bf16.msra.mxu0 0
        %900 = vmatprep.subr.bf16.mxu0 0
        %901 = vmatpush1.bf16.msra.mxu0 0
        %902 = vmatprep.subr.bf16.mxu0 0
        %903 = vmatpush1.bf16.msra.mxu0 0
        %904 = vmatprep.subr.bf16.mxu0 0
        %905 = vmatpush1.bf16.msra.mxu0 0
        %906 = vmatprep.subr.bf16.mxu0 0
        %907 = vmatpush1.bf16.msra.mxu0 0
        %908 = vmatprep.subr.bf16.mxu0 0
        %909 = vmatpush1.bf16.msra.mxu0 0
        %910 = vmatprep.subr.bf16.mxu0 0
        %911 = vmatpush1.bf16.msra.mxu0 0
        %912 = vmatprep.subr.bf16.mxu0 0
        %913 = vmatpush1.bf16.msra.mxu0 0
        %914 = vmatprep.subr.bf16.mxu0 0
        %915 = vmatpush1.bf16.msra.mxu0 0
        %916 = vmatprep.subr.bf16.mxu0 0
        %917 = vmatpush1.bf16.msra.mxu0 0
        %918 = vmatprep.subr.bf16.mxu0 0
        %919 = vmatpush1.bf16.msra.mxu0 0
        %920 = vmatprep.mubr.bf16.mxu0 0
        %921 = vmatmul.mubr.bf16.gmra.mrb[0].mxu0 %v882
        %v922 = vpop.f32.mrb[0].mxu0
        %v923 = vadd.f32 0.0, %v922
        %v924 = vpop.f32.mrb[0].mxu0
        %v925 = vpop.f32.mrb[0].mxu0
        %v926 = vpop.f32.mrb[0].mxu0
        %927 = vdwg.mxu0
        %v929 = vsel %vm644, %v874, 0
        %v932 = vsel %vm884, %v878, 0
        %934 = vmatprep.subr.bf16.mxu0 0
        %935 = vmatpush1.bf16.msra.mxu0 %v932
        %936 = vmatprep.subr.bf16.mxu0 0
        %937 = vmatpush1.bf16.msra.mxu0 0
        %938 = vmatprep.subr.bf16.mxu0 0
        %939 = vmatpush1.bf16.msra.mxu0 0
        %940 = vmatprep.subr.bf16.mxu0 0
        %941 = vmatpush1.bf16.msra.mxu0 0
        %942 = vmatprep.subr.bf16.mxu0 0
        %943 = vmatpush1.bf16.msra.mxu0 0
        %944 = vmatprep.subr.bf16.mxu0 0
        %945 = vmatpush1.bf16.msra.mxu0 0
        %946 = vmatprep.subr.bf16.mxu0 0
        %947 = vmatpush1.bf16.msra.mxu0 0
        %948 = vmatprep.subr.bf16.mxu0 0
        %949 = vmatpush1.bf16.msra.mxu0 0
        %950 = vmatprep.subr.bf16.mxu0 0
        %951 = vmatpush1.bf16.msra.mxu0 0
        %952 = vmatprep.subr.bf16.mxu0 0
        %953 = vmatpush1.bf16.msra.mxu0 0
        %954 = vmatprep.subr.bf16.mxu0 0
        %955 = vmatpush1.bf16.msra.mxu0 0
        %956 = vmatprep.subr.bf16.mxu0 0
        %957 = vmatpush1.bf16.msra.mxu0 0
        %958 = vmatprep.subr.bf16.mxu0 0
        %959 = vmatpush1.bf16.msra.mxu0 0
        %960 = vmatprep.subr.bf16.mxu0 0
        %961 = vmatpush1.bf16.msra.mxu0 0
        %962 = vmatprep.subr.bf16.mxu0 0
        %963 = vmatpush1.bf16.msra.mxu0 0
        %964 = vmatprep.subr.bf16.mxu0 0
        %965 = vmatpush1.bf16.msra.mxu0 0
        %966 = vmatprep.mubr.bf16.mxu0 0
        %967 = vmatmul.mubr.bf16.gmra.mrb[0].mxu0 %v929
        %v968 = vpop.f32.mrb[0].mxu0
        %v969 = vadd.f32 0.0, %v968
        %v970 = vpop.f32.mrb[0].mxu0
        %v971 = vpop.f32.mrb[0].mxu0
        %v972 = vpop.f32.mrb[0].mxu0
        %973 = vdwg.mxu0
        %v975 = vsel %vm644, %v875, 0
        %v978 = vsel %vm884, %v879, 0
        %980 = vmatprep.subr.bf16.mxu0 0
        %981 = vmatpush1.bf16.msra.mxu0 %v978
        %982 = vmatprep.subr.bf16.mxu0 0
        %983 = vmatpush1.bf16.msra.mxu0 0
        %984 = vmatprep.subr.bf16.mxu0 0
        %985 = vmatpush1.bf16.msra.mxu0 0
        %986 = vmatprep.subr.bf16.mxu0 0
        %987 = vmatpush1.bf16.msra.mxu0 0
        %988 = vmatprep.subr.bf16.mxu0 0
        %989 = vmatpush1.bf16.msra.mxu0 0
        %990 = vmatprep.subr.bf16.mxu0 0
        %991 = vmatpush1.bf16.msra.mxu0 0
        %992 = vmatprep.subr.bf16.mxu0 0
        %993 = vmatpush1.bf16.msra.mxu0 0
        %994 = vmatprep.subr.bf16.mxu0 0
        %995 = vmatpush1.bf16.msra.mxu0 0
        %996 = vmatprep.subr.bf16.mxu0 0
        %997 = vmatpush1.bf16.msra.mxu0 0
        %998 = vmatprep.subr.bf16.mxu0 0
        %999 = vmatpush1.bf16.msra.mxu0 0
        %1000 = vmatprep.subr.bf16.mxu0 0
        %1001 = vmatpush1.bf16.msra.mxu0 0
        %1002 = vmatprep.subr.bf16.mxu0 0
        %1003 = vmatpush1.bf16.msra.mxu0 0
        %1004 = vmatprep.subr.bf16.mxu0 0
        %1005 = vmatpush1.bf16.msra.mxu0 0
        %1006 = vmatprep.subr.bf16.mxu0 0
        %1007 = vmatpush1.bf16.msra.mxu0 0
        %1008 = vmatprep.subr.bf16.mxu0 0
        %1009 = vmatpush1.bf16.msra.mxu0 0
        %1010 = vmatprep.subr.bf16.mxu0 0
        %1011 = vmatpush1.bf16.msra.mxu0 0
        %1012 = vmatprep.mubr.bf16.mxu0 0
        %1013 = vmatmul.mubr.bf16.gmra.mrb[0].mxu0 %v975
        %v1014 = vpop.f32.mrb[0].mxu0
        %v1015 = vadd.f32 0.0, %v1014
        %v1016 = vpop.f32.mrb[0].mxu0
        %v1017 = vpop.f32.mrb[0].mxu0
        %v1018 = vpop.f32.mrb[0].mxu0
        %1019 = vdwg.mxu0
        %v1021 = vsel %vm644, %v876, 0
        %v1024 = vsel %vm884, %v880, 0
        %1026 = vmatprep.subr.bf16.mxu0 0
        %1027 = vmatpush1.bf16.msra.mxu0 %v1024
        %1028 = vmatprep.subr.bf16.mxu0 0
        %1029 = vmatpush1.bf16.msra.mxu0 0
        %1030 = vmatprep.subr.bf16.mxu0 0
        %1031 = vmatpush1.bf16.msra.mxu0 0
        %1032 = vmatprep.subr.bf16.mxu0 0
        %1033 = vmatpush1.bf16.msra.mxu0 0
        %1034 = vmatprep.subr.bf16.mxu0 0
        %1035 = vmatpush1.bf16.msra.mxu0 0
        %1036 = vmatprep.subr.bf16.mxu0 0
        %1037 = vmatpush1.bf16.msra.mxu0 0
        %1038 = vmatprep.subr.bf16.mxu0 0
        %1039 = vmatpush1.bf16.msra.mxu0 0
        %1040 = vmatprep.subr.bf16.mxu0 0
        %1041 = vmatpush1.bf16.msra.mxu0 0
        %1042 = vmatprep.subr.bf16.mxu0 0
        %1043 = vmatpush1.bf16.msra.mxu0 0
        %1044 = vmatprep.subr.bf16.mxu0 0
        %1045 = vmatpush1.bf16.msra.mxu0 0
        %1046 = vmatprep.subr.bf16.mxu0 0
        %1047 = vmatpush1.bf16.msra.mxu0 0
        %1048 = vmatprep.subr.bf16.mxu0 0
        %1049 = vmatpush1.bf16.msra.mxu0 0
        %1050 = vmatprep.subr.bf16.mxu0 0
        %1051 = vmatpush1.bf16.msra.mxu0 0
        %1052 = vmatprep.subr.bf16.mxu0 0
        %1053 = vmatpush1.bf16.msra.mxu0 0
        %1054 = vmatprep.subr.bf16.mxu0 0
        %1055 = vmatpush1.bf16.msra.mxu0 0
        %1056 = vmatprep.subr.bf16.mxu0 0
        %1057 = vmatpush1.bf16.msra.mxu0 0
        %1058 = vmatprep.mubr.bf16.mxu0 0
        %1059 = vmatmul.mubr.bf16.gmra.mrb[0].mxu0 %v1021
        %v1060 = vpop.f32.mrb[0].mxu0
        %v1061 = vadd.f32 0.0, %v1060
        %v1062 = vpop.f32.mrb[0].mxu0
        %v1063 = vpop.f32.mrb[0].mxu0
        %v1064 = vpop.f32.mrb[0].mxu0
        %1065 = vdwg.mxu0
        %1067 = vrot.lane.b32.xlu0 %v969, 8
        %v1068 = vpop.permute.xlu0 %1067
        %1071 = vrot.lane.b32.xlu0 %v1015, 16
        %v1072 = vpop.permute.xlu0 %1071
        %1075 = vrot.lane.b32.xlu0 %v1061, 24
        %v1076 = vpop.permute.xlu0 %1075
        %v1078 = vsel %vm644, %v923, %v1068
        %vm1079 = vcmask 130048
        %v1080 = vsel %vm1079, %v1078, %v1072
        %vm1081 = vcmask 195584
        %v1082 = vsel %vm1081, %v1080, %v1076
        %s1083 = scalar_lea.vmem %s487, %s624
        %v1084 = vld [vmem:[%s1083] sm:$0xff]
        %v1085 = vpack.c.bf16 %v1082, %v1082
        %v1086 = vld [vmem:[%s4] sm:$0xf]
        %v1087 = vld [vmem:[%s4 + $0x4] sm:$0xf]
        %v1088 = vld [vmem:[%s4 + $0x8] sm:$0xf]
        %v1089 = vld [vmem:[%s4 + $0xc] sm:$0xf]
        %v1090 = vld [vmem:[%s5] sm:$0x1]
        %v1092 = vlaneseq
        %v1093 = vshrl.u32 %v1092, 7
        %v1094 = vsub.s32 0, %v1093
        %v1095 = vrot.slane %v1090, %v1094
        %v1101 = vunpack.c.l.b16 %v1086
        %v1102 = vunpack.c.l.b16 %v1087
        %v1103 = vunpack.c.l.b16 %v1088
        %v1104 = vunpack.c.l.b16 %v1089
        %v1105 = vpack.c.b16 %v1102, %v1101
        %v1106 = vpack.c.b16 %v1104, %v1103
        %vm1109 = vcmask 261120
        %v1111 = vsel %vm1109, %v1085, 0
        %1113 = vmatprep.subr.bf16.mxu0 0
        %1114 = vmatpush1.bf16.msra.mxu0 %v1105
        %1115 = vmatprep.subr.bf16.mxu0 0
        %1116 = vmatpush1.bf16.msra.mxu0 %v1106
        %1117 = vmatprep.subr.bf16.mxu0 0
        %1118 = vmatpush1.bf16.msra.mxu0 0
        %1119 = vmatprep.subr.bf16.mxu0 0
        %1120 = vmatpush1.bf16.msra.mxu0 0
        %1121 = vmatprep.subr.bf16.mxu0 0
        %1122 = vmatpush1.bf16.msra.mxu0 0
        %1123 = vmatprep.subr.bf16.mxu0 0
        %1124 = vmatpush1.bf16.msra.mxu0 0
        %1125 = vmatprep.subr.bf16.mxu0 0
        %1126 = vmatpush1.bf16.msra.mxu0 0
        %1127 = vmatprep.subr.bf16.mxu0 0
        %1128 = vmatpush1.bf16.msra.mxu0 0
        %1129 = vmatprep.subr.bf16.mxu0 0
        %1130 = vmatpush1.bf16.msra.mxu0 0
        %1131 = vmatprep.subr.bf16.mxu0 0
        %1132 = vmatpush1.bf16.msra.mxu0 0
        %1133 = vmatprep.subr.bf16.mxu0 0
        %1134 = vmatpush1.bf16.msra.mxu0 0
        %1135 = vmatprep.subr.bf16.mxu0 0
        %1136 = vmatpush1.bf16.msra.mxu0 0
        %1137 = vmatprep.subr.bf16.mxu0 0
        %1138 = vmatpush1.bf16.msra.mxu0 0
        %1139 = vmatprep.subr.bf16.mxu0 0
        %1140 = vmatpush1.bf16.msra.mxu0 0
        %1141 = vmatprep.subr.bf16.mxu0 0
        %1142 = vmatpush1.bf16.msra.mxu0 0
        %1143 = vmatprep.subr.bf16.mxu0 0
        %1144 = vmatpush1.bf16.msra.mxu0 0
        %1145 = vmatprep.mubr.bf16.mxu0 0
        %1146 = vmatmul.mubr.bf16.gmra.mrb[0].mxu0 %v1111
        %v1147 = vpop.f32.mrb[0].mxu0
        %v1148 = vadd.f32 %v1095, %v1147
        %v1149 = vpop.f32.mrb[0].mxu0
        %v1150 = vpop.f32.mrb[0].mxu0
        %v1151 = vpop.f32.mrb[0].mxu0
        %1152 = vdwg.mxu0
        %v1153 = vadd.f32 %v1148, %v1084
        %v1154 = vld [vmem:[%s6] sm:$0x1]
        %v1155 = vld [vmem:[%s7] sm:$0x1]
        %v1156 = vsel %vm1109, %v1153, 0.0
        %1157 = vadd.xlane.f32.xlu0 %v1156
        %v1158 = vpop.xlane.xlu0 %1157
        %v1159 = vrcp.pop 32.0
        %v1160 = vmul.f32 %v1158, %v1159
        %v1161 = vsub.f32 %v1153, %v1160
        %v1162 = vmul.f32 %v1161, %v1161
        %v1163 = vsel %vm1109, %v1162, 0.0
        %1164 = vadd.xlane.f32.xlu0 %v1163
        %v1165 = vpop.xlane.xlu0 %1164
        %v1166 = vmul.f32 %v1165, %v1159
        %v1167 = vadd.f32 %v1166, 1e-12
        %v1168 = vrsqrt.pop %v1167
        %v1169 = vmul.f32 %v1161, %v1168
        %v1171 = vlaneseq
        %v1172 = vshrl.u32 %v1171, 7
        %v1173 = vsub.s32 0, %v1172
        %v1174 = vrot.slane %v1154, %v1173
        %v1176 = vmul.f32 %v1169, %v1174
        %v1178 = vlaneseq
        %v1179 = vshrl.u32 %v1178, 7
        %v1180 = vsub.s32 0, %v1179
        %v1181 = vrot.slane %v1155, %v1180
        %v1183 = vadd.f32 %v1176, %v1181
        %v1184 = vpack.c.bf16 %v1183, %v1183
        %v1185 = vld [vmem:[%s8] sm:$0xf]
        %v1186 = vld [vmem:[%s8 + $0x4] sm:$0xf]
        %v1187 = vld [vmem:[%s8 + $0x8] sm:$0xf]
        %v1188 = vld [vmem:[%s8 + $0xc] sm:$0xf]
        %v1189 = vld [vmem:[%s9] sm:$0x1]
        %v1191 = vlaneseq
        %v1192 = vshrl.u32 %v1191, 7
        %v1193 = vsub.s32 0, %v1192
        %v1194 = vrot.slane %v1189, %v1193
        %v1200 = vunpack.c.l.b16 %v1185
        %v1201 = vunpack.c.l.b16 %v1186
        %v1202 = vunpack.c.l.b16 %v1187
        %v1203 = vunpack.c.l.b16 %v1188
        %v1204 = vpack.c.b16 %v1201, %v1200
        %v1205 = vpack.c.b16 %v1203, %v1202
        %v1209 = vsel %vm1109, %v1184, 0
        %1211 = vmatprep.subr.bf16.mxu0 0
        %1212 = vmatpush1.bf16.msra.mxu0 %v1204
        %1213 = vmatprep.subr.bf16.mxu0 0
        %1214 = vmatpush1.bf16.msra.mxu0 %v1205
        %1215 = vmatprep.subr.bf16.mxu0 0
        %1216 = vmatpush1.bf16.msra.mxu0 0
        %1217 = vmatprep.subr.bf16.mxu0 0
        %1218 = vmatpush1.bf16.msra.mxu0 0
        %1219 = vmatprep.subr.bf16.mxu0 0
        %1220 = vmatpush1.bf16.msra.mxu0 0
        %1221 = vmatprep.subr.bf16.mxu0 0
        %1222 = vmatpush1.bf16.msra.mxu0 0
        %1223 = vmatprep.subr.bf16.mxu0 0
        %1224 = vmatpush1.bf16.msra.mxu0 0
        %1225 = vmatprep.subr.bf16.mxu0 0
        %1226 = vmatpush1.bf16.msra.mxu0 0
        %1227 = vmatprep.subr.bf16.mxu0 0
        %1228 = vmatpush1.bf16.msra.mxu0 0
        %1229 = vmatprep.subr.bf16.mxu0 0
        %1230 = vmatpush1.bf16.msra.mxu0 0
        %1231 = vmatprep.subr.bf16.mxu0 0
        %1232 = vmatpush1.bf16.msra.mxu0 0
        %1233 = vmatprep.subr.bf16.mxu0 0
        %1234 = vmatpush1.bf16.msra.mxu0 0
        %1235 = vmatprep.subr.bf16.mxu0 0
        %1236 = vmatpush1.bf16.msra.mxu0 0
        %1237 = vmatprep.subr.bf16.mxu0 0
        %1238 = vmatpush1.bf16.msra.mxu0 0
        %1239 = vmatprep.subr.bf16.mxu0 0
        %1240 = vmatpush1.bf16.msra.mxu0 0
        %1241 = vmatprep.subr.bf16.mxu0 0
        %1242 = vmatpush1.bf16.msra.mxu0 0
        %1243 = vmatprep.mubr.bf16.mxu0 0
        %1244 = vmatmul.mubr.bf16.gmra.mrb[0].mxu0 %v1209
        %v1245 = vpop.f32.mrb[0].mxu0
        %v1246 = vadd.f32 %v1194, %v1245
        %v1247 = vpop.f32.mrb[0].mxu0
        %v1248 = vpop.f32.mrb[0].mxu0
        %v1249 = vpop.f32.mrb[0].mxu0
        %1250 = vdwg.mxu0
        %v1251 = vmul.f32 %v1246, 0.5
        %v1252 = vmul.f32 %v1246, %v1246
        %v1253 = vmul.f32 %v1246, %v1252
        %v1254 = vmul.f32 %v1253, 0.044715
        %v1255 = vadd.f32 %v1246, %v1254
        %v1256 = vmul.f32 %v1255, 0.7978846
        %v1257 = vtanh.pop %v1256
        %v1258 = vadd.f32 %v1257, 1.0
        %v1259 = vmul.f32 %v1251, %v1258
        %v1260 = vpack.c.bf16 %v1259, %v1259
        %v1261 = vld [vmem:[%s10] sm:$0xf]
        %v1262 = vld [vmem:[%s10 + $0x4] sm:$0xf]
        %v1263 = vld [vmem:[%s10 + $0x8] sm:$0xf]
        %v1264 = vld [vmem:[%s10 + $0xc] sm:$0xf]
        %v1265 = vld [vmem:[%s10 + $0x10] sm:$0xf]
        %v1266 = vld [vmem:[%s10 + $0x14] sm:$0xf]
        %v1267 = vld [vmem:[%s10 + $0x18] sm:$0xf]
        %v1268 = vld [vmem:[%s10 + $0x1c] sm:$0xf]
        %v1269 = vld [vmem:[%s10 + $0x20] sm:$0xf]
        %v1270 = vld [vmem:[%s10 + $0x24] sm:$0xf]
        %v1271 = vld [vmem:[%s10 + $0x28] sm:$0xf]
        %v1272 = vld [vmem:[%s10 + $0x2c] sm:$0xf]
        %v1273 = vld [vmem:[%s10 + $0x30] sm:$0xf]
        %v1274 = vld [vmem:[%s10 + $0x34] sm:$0xf]
        %v1275 = vld [vmem:[%s10 + $0x38] sm:$0xf]
        %v1276 = vld [vmem:[%s10 + $0x3c] sm:$0xf]
        %v1277 = vld [vmem:[%s11] sm:$0x1]
        %v1279 = vlaneseq
        %v1280 = vshrl.u32 %v1279, 7
        %v1281 = vsub.s32 0, %v1280
        %v1282 = vrot.slane %v1277, %v1281
        %v1300 = vunpack.c.l.b16 %v1261
        %v1301 = vunpack.c.l.b16 %v1262
        %v1302 = vunpack.c.l.b16 %v1263
        %v1303 = vunpack.c.l.b16 %v1264
        %v1304 = vunpack.c.l.b16 %v1265
        %v1305 = vunpack.c.l.b16 %v1266
        %v1306 = vunpack.c.l.b16 %v1267
        %v1307 = vunpack.c.l.b16 %v1268
        %v1308 = vunpack.c.l.b16 %v1269
        %v1309 = vunpack.c.l.b16 %v1270
        %v1310 = vunpack.c.l.b16 %v1271
        %v1311 = vunpack.c.l.b16 %v1272
        %v1312 = vunpack.c.l.b16 %v1273
        %v1313 = vunpack.c.l.b16 %v1274
        %v1314 = vunpack.c.l.b16 %v1275
        %v1315 = vunpack.c.l.b16 %v1276
        %v1316 = vpack.c.b16 %v1301, %v1300
        %v1317 = vpack.c.b16 %v1303, %v1302
        %v1318 = vpack.c.b16 %v1305, %v1304
        %v1319 = vpack.c.b16 %v1307, %v1306
        %v1320 = vpack.c.b16 %v1309, %v1308
        %v1321 = vpack.c.b16 %v1311, %v1310
        %v1322 = vpack.c.b16 %v1313, %v1312
        %v1323 = vpack.c.b16 %v1315, %v1314
        %1332 = vmatprep.subr.bf16.mxu0 0
        %1333 = vmatpush1.bf16.msra.mxu0 %v1316
        %1334 = vmatprep.subr.bf16.mxu0 0
        %1335 = vmatpush1.bf16.msra.mxu0 %v1317
        %1336 = vmatprep.subr.bf16.mxu0 0
        %1337 = vmatpush1.bf16.msra.mxu0 %v1318
        %1338 = vmatprep.subr.bf16.mxu0 0
        %1339 = vmatpush1.bf16.msra.mxu0 %v1319
        %1340 = vmatprep.subr.bf16.mxu0 0
        %1341 = vmatpush1.bf16.msra.mxu0 %v1320
        %1342 = vmatprep.subr.bf16.mxu0 0
        %1343 = vmatpush1.bf16.msra.mxu0 %v1321
        %1344 = vmatprep.subr.bf16.mxu0 0
        %1345 = vmatpush1.bf16.msra.mxu0 %v1322
        %1346 = vmatprep.subr.bf16.mxu0 0
        %1347 = vmatpush1.bf16.msra.mxu0 %v1323
        %1348 = vmatprep.subr.bf16.mxu0 0
        %1349 = vmatpush1.bf16.msra.mxu0 0
        %1350 = vmatprep.subr.bf16.mxu0 0
        %1351 = vmatpush1.bf16.msra.mxu0 0
        %1352 = vmatprep.subr.bf16.mxu0 0
        %1353 = vmatpush1.bf16.msra.mxu0 0
        %1354 = vmatprep.subr.bf16.mxu0 0
        %1355 = vmatpush1.bf16.msra.mxu0 0
        %1356 = vmatprep.subr.bf16.mxu0 0
        %1357 = vmatpush1.bf16.msra.mxu0 0
        %1358 = vmatprep.subr.bf16.mxu0 0
        %1359 = vmatpush1.bf16.msra.mxu0 0
        %1360 = vmatprep.subr.bf16.mxu0 0
        %1361 = vmatpush1.bf16.msra.mxu0 0
        %1362 = vmatprep.subr.bf16.mxu0 0
        %1363 = vmatpush1.bf16.msra.mxu0 0
        %1364 = vmatprep.mubr.bf16.mxu0 0
        %1365 = vmatmul.mubr.bf16.gmra.mrb[0].mxu0 %v1260
        %v1366 = vpop.f32.mrb[0].mxu0
        %v1367 = vadd.f32 %v1282, %v1366
        %v1368 = vpop.f32.mrb[0].mxu0
        %v1369 = vpop.f32.mrb[0].mxu0
        %v1370 = vpop.f32.mrb[0].mxu0
        %1371 = vdwg.mxu0
        %v1372 = vadd.f32 %v1367, %v1183
        %v1373 = vld [vmem:[%s12] sm:$0x1]
        %v1374 = vld [vmem:[%s13] sm:$0x1]
        %v1375 = vsel %vm1109, %v1372, 0.0
        %1376 = vadd.xlane.f32.xlu0 %v1375
        %v1377 = vpop.xlane.xlu0 %1376
        %v1378 = vmul.f32 %v1377, %v1159
        %v1379 = vsub.f32 %v1372, %v1378
        %v1380 = vmul.f32 %v1379, %v1379
        %v1381 = vsel %vm1109, %v1380, 0.0
        %1382 = vadd.xlane.f32.xlu0 %v1381
        %v1383 = vpop.xlane.xlu0 %1382
        %v1384 = vmul.f32 %v1383, %v1159
        %v1385 = vadd.f32 %v1384, 1e-12
        %v1386 = vrsqrt.pop %v1385
        %v1387 = vmul.f32 %v1379, %v1386
        %v1389 = vlaneseq
        %v1390 = vshrl.u32 %v1389, 7
        %v1391 = vsub.s32 0, %v1390
        %v1392 = vrot.slane %v1373, %v1391
        %v1394 = vmul.f32 %v1387, %v1392
        %v1396 = vlaneseq
        %v1397 = vshrl.u32 %v1396, 7
        %v1398 = vsub.s32 0, %v1397
        %v1399 = vrot.slane %v1374, %v1398
        %v1401 = vadd.f32 %v1394, %v1399
        %1402 = vst.msk [vmem:[%s483] sm:$0xff] %vm1109, %v1401
        %s1403 = sand.u32 %s354, 1
        %s1404 = scalar_lea.sflag [#allocation6], %s1403
        %s1405 = sand.u32 %s354, 1
        %s1406 = smul.addr %s1405, 8
        %s1407 = scalar_lea.vmem [#allocation5], %s1406
        // Predicated region
        $region81: #{tpu_custom_call.1} parent=75 // pred_check
          %p1408 = pneg %p364
        $region82: #{tpu_custom_call.1} parent=75 // pred_check_branch
          %1410 = sbr.rel (%p1408) target = $region84
        $region83: #{tpu_custom_call.1} parent=75 // pred_region
          %s1412 = ssub.s32 128, 128
          %1413 = vsyncadd %s1404, %s1412
          %s1414 = sadd.s32 %s33, %s32
          %s1415 = smul.addr %s1414, 128
          %s1416 = scalar_lea.hbm %s14, %s1415
          %s1418 = sshll.u32 %s1407, 4
          %s1419 = int_to_ptr.vmem [resolvable:$true] %s1418
          %1421 = dma.vmem_to_hbm [thread:$0]  %s1419, 128, %s1416, %s1404
        $region84: #{tpu_custom_call.1} parent=75 // pred_fallthru
          _
      $region76: #{tpu_custom_call.1} parent=5 // pred_fallthru
        _
      %p1422 = scmp.le.s32.totalorder 2, %s23
      // Predicated region
      $region85: #{tpu_custom_call.1} parent=5 // pred_check
        %p1423 = pneg %p1422
      $region86: #{tpu_custom_call.1} parent=5 // pred_check_branch
        %1425 = sbr.rel (%p1423) target = $region88
      $region87: #{tpu_custom_call.1} parent=5 // pred_region
        %s1426 = ssub.s32 %s23, 2
        // Predicated region
        $region89: #{tpu_custom_call.1} parent=87 // pred_check
          %p1427 = pneg %p370
        $region90: #{tpu_custom_call.1} parent=87 // pred_check_branch
          %1429 = sbr.rel (%p1427) target = $region92
        $region91: #{tpu_custom_call.1} parent=87 // pred_region
          %s1430 = sand.u32 %s355, 1
          %s1431 = scalar_lea.sflag [#allocation6], %s1430
          %s1432 = sand.u32 %s355, 1
          %s1433 = smul.addr %s1432, 8
          %s1434 = scalar_lea.vmem [#allocation5], %s1433
          %1435 = dma.done %s1431, 128
        $region92: #{tpu_custom_call.1} parent=87 // pred_fallthru
          _
      $region88: #{tpu_custom_call.1} parent=5 // pred_fallthru
        _
    $region6: #{tpu_custom_call.1} parent=1 // loop_footer
      %s27 = sadd.s32 1, %s23
    $region7: #{tpu_custom_call.1} parent=1 // loop_footer_branch
      %22 = sbr.rel target = $region3
    $region8: #{tpu_custom_call.1} parent=1 // loop_exit
      _
    %1436 = vsyncpa [#allocation6], 1
    %s1437 = scalar_lea.sflag [#allocation6], 1
    %1438 = vsyncpa %s1437, 1

</llo_original>
